<compile_context>
chip_gen: v7x
topology: tpu7x:2x2x1
jax: 0.10.0
libtpu: 0.0.40
codegen_flags: <defaults>
</compile_context>

<pallas_src>
import math

import jax
import jax.numpy as jnp
from jax.experimental import pallas as pl
from jax.experimental.pallas import tpu as pltpu

HEAD_NUM = 4  # out_dim must be divisible by HEAD_NUM


def _layernorm(x, gamma, beta, eps=1e-5):
    mu = jnp.mean(x, axis=-1, keepdims=True)
    var = jnp.mean((x - mu) ** 2, axis=-1, keepdims=True)
    return (x - mu) * jax.lax.rsqrt(var + eps) * gamma + beta


def _make_kernel(head_num, use_bf16_matmul):
    mm_dtype = jnp.bfloat16 if use_bf16_matmul else jnp.float32

    def encoder_kernel(x_ref, mask_ref,
                       wq_ref, bq_ref, wk_ref, bk_ref, wv_ref, bv_ref,
                       wo1_ref, bo1_ref, g1_ref, be1_ref,
                       wi_ref, bi_ref,
                       wo2_ref, bo2_ref, g2_ref, be2_ref,
                       out_ref):
        x = x_ref[...].astype(jnp.float32)        # (S, D)  -- one batch element
        mask = mask_ref[...].astype(jnp.float32)  # (1, S)
        S, D = x.shape
        H = head_num
        hd = D // H

        def matmul2d(a, w_ref, b_ref):
            # Single 2-D MXU matmul with f32 accumulation, bias broadcast-add.
            return jnp.dot(a.astype(mm_dtype), w_ref[...].astype(mm_dtype),
                           preferred_element_type=jnp.float32) + b_ref[...]

        # --- Self_attention (all heads at once) ---
        q = matmul2d(x, wq_ref, bq_ref) * (1.0 / math.sqrt(hd))  # scale folded in
        k = matmul2d(x, wk_ref, bk_ref)
        v = matmul2d(x, wv_ref, bv_ref)

        qh = jnp.swapaxes(q.reshape(S, H, hd), 0, 1)  # (H, S, hd)
        kh = jnp.swapaxes(k.reshape(S, H, hd), 0, 1)
        vh = jnp.swapaxes(v.reshape(S, H, hd), 0, 1)

        # Batched score matmul over all heads: (H, S, S).
        scores = jnp.einsum('hqd,hkd->hqk',
                            qh.astype(mm_dtype), kh.astype(mm_dtype),
                            preferred_element_type=jnp.float32)
        scores = scores + (mask * -1e15)[None, :, :]          # f32 mask add
        scores = scores - jnp.max(scores, axis=-1, keepdims=True)
        e = jnp.exp(scores)
        denom = jnp.sum(e, axis=-1, keepdims=True)
        att = e * pl.reciprocal(denom, approx=False)          # mul, not per-elem div

        ctx = jnp.einsum('hqk,hkd->hqd',
                         att.astype(mm_dtype), vh.astype(mm_dtype),
                         preferred_element_type=jnp.float32)  # (H, S, hd)
        ctx = jnp.swapaxes(ctx, 0, 1).reshape(S, D)           # (S, D)

        # --- Attention_output #1: Linear -> (dropout=id) -> LayerNorm(+x) ---
        h = matmul2d(ctx, wo1_ref, bo1_ref)
        h = _layernorm(h + x, g1_ref[...], be1_ref[...])

        # --- Attention_intermediate: Linear -> exact GELU ---
        inter = matmul2d(h, wi_ref, bi_ref)
        inter = 0.5 * inter * (1.0 + jax.lax.erf(inter * (1.0 / math.sqrt(2.0))))

        # --- Attention_output #2: Linear -> (dropout=id) -> LayerNorm(+h) ---
        o = matmul2d(inter, wo2_ref, bo2_ref)
        o = _layernorm(o + h, g2_ref[...], be2_ref[...])

        out_ref[...] = o.astype(out_ref.dtype)

    return encoder_kernel


def self_attention_encoder_layer(x, mask, params, *, head_num=HEAD_NUM,
                                 use_bf16_matmul=False):
    """x: (B, S, D), mask: (B, S) with 1.0 == padded. params: 16 arrays."""
    B, S, D = x.shape
    assert D % head_num == 0
    mask3 = mask.reshape(B, 1, S)  # last two dims lane-friendly for BlockSpec

    # Activations: one batch element per grid step (leading dim squeezed).
    act_spec = pl.BlockSpec((None, S, D), lambda b: (b, 0, 0))
    mask_spec = pl.BlockSpec((None, 1, S), lambda b: (b, 0, 0))
    # Weights / biases / LN params: constant index_map -> DMA'd once, resident.
    w_spec = pl.BlockSpec((D, D), lambda b: (0, 0))
    vec_spec = pl.BlockSpec((1, D), lambda b: (0, 0))

    in_specs = [act_spec, mask_spec,
                w_spec, vec_spec,                       # Q
                w_spec, vec_spec,                       # K
                w_spec, vec_spec,                       # V
                w_spec, vec_spec, vec_spec, vec_spec,   # self_output + LN1
                w_spec, vec_spec,                       # intermediate
                w_spec, vec_spec, vec_spec, vec_spec]   # output + LN2

    # Advisory cost estimate: 6 dense D x D projections + 2 attention matmuls.
    flops = 2 * B * S * D * (6 * D) + 4 * B * S * S * D
    transcendentals = B * head_num * S * S + B * S * D
    bytes_accessed = 4 * (2 * B * S * D + 6 * D * D + 10 * D + B * S)

    kernel = _make_kernel(head_num, use_bf16_matmul)

    return pl.pallas_call(
        kernel,
        grid=(B,),
        in_specs=in_specs,
        out_specs=act_spec,
        out_shape=jax.ShapeDtypeStruct((B, S, D), x.dtype),
        compiler_params=pltpu.CompilerParams(
            dimension_semantics=("parallel",)),
        cost_estimate=pl.CostEstimate(flops=flops,
                                      transcendentals=transcendentals,
                                      bytes_accessed=bytes_accessed),
    )(x, mask3,
      *params)


def make_params(key, dim):
    """Deterministic synthetic parameters (PyTorch-like uniform init)."""
    def linear_params(k, din, dout):
        k1, k2 = jax.random.split(k)
        bound = 1.0 / math.sqrt(din)
        w = jax.random.uniform(k1, (din, dout), jnp.float32, -bound, bound)
        b = jax.random.uniform(k2, (1, dout), jnp.float32, -bound, bound)
        return w, b

    keys = jax.random.split(key, 6)
    wq, bq = linear_params(keys[0], dim, dim)    # Self_attention.Q
    wk, bk = linear_params(keys[1], dim, dim)    # Self_attention.K
    wv, bv = linear_params(keys[2], dim, dim)    # Self_attention.V
    wo1, bo1 = linear_params(keys[3], dim, dim)  # self_output.feedforward
    g1 = jnp.ones((1, dim), jnp.float32)         # self_output.layernorm
    be1 = jnp.zeros((1, dim), jnp.float32)
    wi, bi = linear_params(keys[4], dim, dim)    # intermediate.feedforward
    wo2, bo2 = linear_params(keys[5], dim, dim)  # output.feedforward
    g2 = jnp.ones((1, dim), jnp.float32)         # output.layernorm
    be2 = jnp.zeros((1, dim), jnp.float32)
    return (wq, bq, wk, bk, wv, bv, wo1, bo1, g1, be1,
            wi, bi, wo2, bo2, g2, be2)


def reference(x, mask, params):
    """Pure-JAX reference mirroring the PyTorch forward (eval mode)."""
    (wq, bq, wk, bk, wv, bv, wo1, bo1, g1, be1,
     wi, bi, wo2, bo2, g2, be2) = params
    B, S, D = x.shape
    H, hd = HEAD_NUM, D // HEAD_NUM

    def split_heads(t):  # (B,S,D) -> (B,H,S,hd)
        return t.reshape(B, S, H, hd).transpose(0, 2, 1, 3)

    q = split_heads(x @ wq + bq)
    k = split_heads(x @ wk + bk)
    v = split_heads(x @ wv + bv)
    score = jnp.einsum('bhqd,bhkd->bhqk', q, k) / math.sqrt(hd)
    score = score + (mask * -1e15)[:, None, None, :]
    att = jax.nn.softmax(score, axis=-1)
    ctx = jnp.einsum('bhqk,bhkd->bhqd', att, v).transpose(0, 2, 1, 3).reshape(B, S, D)

    def ln(t, g, b):
        mu = jnp.mean(t, -1, keepdims=True)
        var = jnp.mean((t - mu) ** 2, -1, keepdims=True)
        return (t - mu) / jnp.sqrt(var + 1e-5) * g + b

    h = ln((ctx @ wo1 + bo1) + x, g1, be1)
    inter = jax.nn.gelu(h @ wi + bi, approximate=False)
    return ln((inter @ wo2 + bo2) + h, g2, be2)


if __name__ == "__main__":
    B, S, D = 2, 8, 32  # batch, seq_len, hidden (in_dim == out_dim, 4 heads)
    key = jax.random.PRNGKey(0)
    kx, kp = jax.random.split(key)

    x = jax.random.normal(kx, (B, S, D), jnp.float32)
    # mask: 1.0 = padded position (gets -1e15 added to its attention scores)
    lengths = jnp.array([8, 5])
    mask = (jnp.arange(S)[None, :] >= lengths[:, None]).astype(jnp.float32)

    params = make_params(kp, D)

    out = self_attention_encoder_layer(x, mask, params)
    out = jax.block_until_ready(out)

    ref = reference(x, mask, params)
    assert out.shape == (B, S, D)
    assert jnp.allclose(out, ref, rtol=1e-4, atol=1e-4), \
        f"max abs err {jnp.max(jnp.abs(out - ref))}"

    print("KERNEL_OK")
</pallas_src>

<mosaic_0001>
module attributes {stable_mosaic.version = 11 : i64} {
  func.func @encoder_kernel(%arg0: i32, %arg1: memref<1x8x32xf32, #tpu.memory_space<vmem>>, %arg2: memref<1x1x8xf32, #tpu.memory_space<vmem>>, %arg3: memref<32x32xf32, #tpu.memory_space<vmem>>, %arg4: memref<1x32xf32, #tpu.memory_space<vmem>>, %arg5: memref<32x32xf32, #tpu.memory_space<vmem>>, %arg6: memref<1x32xf32, #tpu.memory_space<vmem>>, %arg7: memref<32x32xf32, #tpu.memory_space<vmem>>, %arg8: memref<1x32xf32, #tpu.memory_space<vmem>>, %arg9: memref<32x32xf32, #tpu.memory_space<vmem>>, %arg10: memref<1x32xf32, #tpu.memory_space<vmem>>, %arg11: memref<1x32xf32, #tpu.memory_space<vmem>>, %arg12: memref<1x32xf32, #tpu.memory_space<vmem>>, %arg13: memref<32x32xf32, #tpu.memory_space<vmem>>, %arg14: memref<1x32xf32, #tpu.memory_space<vmem>>, %arg15: memref<32x32xf32, #tpu.memory_space<vmem>>, %arg16: memref<1x32xf32, #tpu.memory_space<vmem>>, %arg17: memref<1x32xf32, #tpu.memory_space<vmem>>, %arg18: memref<1x32xf32, #tpu.memory_space<vmem>>, %arg19: memref<1x8x32xf32, #tpu.memory_space<vmem>>) attributes {dimension_semantics = [#tpu.dimension_semantics<parallel>], iteration_bounds = array<i64: 2>, scalar_prefetch = 0 : i64, scratch_operands = 0 : i64, tpu.core_type = #tpu.core_type<tc>, window_params = [{transform_indices = @transform_0, window_bounds = array<i64: 1, 8, 32>}, {transform_indices = @transform_1, window_bounds = array<i64: 1, 1, 8>}, {pipeline_mode = #tpu.pipeline_mode<synchronous>, transform_indices = @transform_2, window_bounds = array<i64: 32, 32>}, {pipeline_mode = #tpu.pipeline_mode<synchronous>, transform_indices = @transform_3, window_bounds = array<i64: 1, 32>}, {pipeline_mode = #tpu.pipeline_mode<synchronous>, transform_indices = @transform_4, window_bounds = array<i64: 32, 32>}, {pipeline_mode = #tpu.pipeline_mode<synchronous>, transform_indices = @transform_5, window_bounds = array<i64: 1, 32>}, {pipeline_mode = #tpu.pipeline_mode<synchronous>, transform_indices = @transform_6, window_bounds = array<i64: 32, 32>}, {pipeline_mode = #tpu.pipeline_mode<synchronous>, transform_indices = @transform_7, window_bounds = array<i64: 1, 32>}, {pipeline_mode = #tpu.pipeline_mode<synchronous>, transform_indices = @transform_8, window_bounds = array<i64: 32, 32>}, {pipeline_mode = #tpu.pipeline_mode<synchronous>, transform_indices = @transform_9, window_bounds = array<i64: 1, 32>}, {pipeline_mode = #tpu.pipeline_mode<synchronous>, transform_indices = @transform_10, window_bounds = array<i64: 1, 32>}, {pipeline_mode = #tpu.pipeline_mode<synchronous>, transform_indices = @transform_11, window_bounds = array<i64: 1, 32>}, {pipeline_mode = #tpu.pipeline_mode<synchronous>, transform_indices = @transform_12, window_bounds = array<i64: 32, 32>}, {pipeline_mode = #tpu.pipeline_mode<synchronous>, transform_indices = @transform_13, window_bounds = array<i64: 1, 32>}, {pipeline_mode = #tpu.pipeline_mode<synchronous>, transform_indices = @transform_14, window_bounds = array<i64: 32, 32>}, {pipeline_mode = #tpu.pipeline_mode<synchronous>, transform_indices = @transform_15, window_bounds = array<i64: 1, 32>}, {pipeline_mode = #tpu.pipeline_mode<synchronous>, transform_indices = @transform_16, window_bounds = array<i64: 1, 32>}, {pipeline_mode = #tpu.pipeline_mode<synchronous>, transform_indices = @transform_17, window_bounds = array<i64: 1, 32>}, {transform_indices = @transform_18, window_bounds = array<i64: 1, 8, 32>}]} {
    %c0 = arith.constant 0 : index
    %c0_0 = arith.constant 0 : index
    %c0_1 = arith.constant 0 : index
    %0 = vector.load %arg1[%c0, %c0_0, %c0_1] : memref<1x8x32xf32, #tpu.memory_space<vmem>>, vector<1x8x32xf32>
    %1 = vector.shape_cast %0 : vector<1x8x32xf32> to vector<8x32xf32>
    %c0_2 = arith.constant 0 : index
    %c0_3 = arith.constant 0 : index
    %c0_4 = arith.constant 0 : index
    %2 = vector.load %arg2[%c0_2, %c0_3, %c0_4] : memref<1x1x8xf32, #tpu.memory_space<vmem>>, vector<1x1x8xf32>
    %3 = vector.shape_cast %2 : vector<1x1x8xf32> to vector<1x8xf32>
    %c0_5 = arith.constant 0 : index
    %c0_6 = arith.constant 0 : index
    %4 = vector.load %arg3[%c0_5, %c0_6] : memref<32x32xf32, #tpu.memory_space<vmem>>, vector<32x32xf32>
    %cst = arith.constant dense<0.000000e+00> : vector<8x32xf32>
    %5 = tpu.matmul %1, %4, %cst {dimension_numbers = #tpu.dot_dimension_numbers<[1], [0], [0], [1], [0, 0, 1, 1], [], []>} : vector<8x32xf32>, vector<32x32xf32>, vector<8x32xf32> -> vector<8x32xf32>
    %c0_7 = arith.constant 0 : index
    %c0_8 = arith.constant 0 : index
    %6 = vector.load %arg4[%c0_7, %c0_8] : memref<1x32xf32, #tpu.memory_space<vmem>>, vector<1x32xf32>
    %7 = vector.broadcast %6 : vector<1x32xf32> to vector<8x32xf32>
    %8 = arith.addf %5, %7 : vector<8x32xf32>
    %cst_9 = arith.constant 0.353553385 : f32
    %9 = vector.broadcast %cst_9 : f32 to vector<8x32xf32>
    %10 = arith.mulf %8, %9 : vector<8x32xf32>
    %c0_10 = arith.constant 0 : index
    %c0_11 = arith.constant 0 : index
    %11 = vector.load %arg5[%c0_10, %c0_11] : memref<32x32xf32, #tpu.memory_space<vmem>>, vector<32x32xf32>
    %cst_12 = arith.constant dense<0.000000e+00> : vector<8x32xf32>
    %12 = tpu.matmul %1, %11, %cst_12 {dimension_numbers = #tpu.dot_dimension_numbers<[1], [0], [0], [1], [0, 0, 1, 1], [], []>} : vector<8x32xf32>, vector<32x32xf32>, vector<8x32xf32> -> vector<8x32xf32>
    %c0_13 = arith.constant 0 : index
    %c0_14 = arith.constant 0 : index
    %13 = vector.load %arg6[%c0_13, %c0_14] : memref<1x32xf32, #tpu.memory_space<vmem>>, vector<1x32xf32>
    %14 = vector.broadcast %13 : vector<1x32xf32> to vector<8x32xf32>
    %15 = arith.addf %12, %14 : vector<8x32xf32>
    %c0_15 = arith.constant 0 : index
    %c0_16 = arith.constant 0 : index
    %16 = vector.load %arg7[%c0_15, %c0_16] : memref<32x32xf32, #tpu.memory_space<vmem>>, vector<32x32xf32>
    %cst_17 = arith.constant dense<0.000000e+00> : vector<8x32xf32>
    %17 = tpu.matmul %1, %16, %cst_17 {dimension_numbers = #tpu.dot_dimension_numbers<[1], [0], [0], [1], [0, 0, 1, 1], [], []>} : vector<8x32xf32>, vector<32x32xf32>, vector<8x32xf32> -> vector<8x32xf32>
    %c0_18 = arith.constant 0 : index
    %c0_19 = arith.constant 0 : index
    %18 = vector.load %arg8[%c0_18, %c0_19] : memref<1x32xf32, #tpu.memory_space<vmem>>, vector<1x32xf32>
    %19 = vector.broadcast %18 : vector<1x32xf32> to vector<8x32xf32>
    %20 = arith.addf %17, %19 : vector<8x32xf32>
    %21 = vector.shape_cast %10 : vector<8x32xf32> to vector<8x4x8xf32>
    %22 = tpu.transpose %21, [1, 0, 2] : vector<8x4x8xf32> -> vector<4x8x8xf32>
    %23 = vector.shape_cast %15 : vector<8x32xf32> to vector<8x4x8xf32>
    %24 = tpu.transpose %23, [1, 0, 2] : vector<8x4x8xf32> -> vector<4x8x8xf32>
    %25 = vector.shape_cast %20 : vector<8x32xf32> to vector<8x4x8xf32>
    %26 = tpu.transpose %25, [1, 0, 2] : vector<8x4x8xf32> -> vector<4x8x8xf32>
    "tpu.trace_start"() <{level = 10 : i32, message = "hqd,hkd->hqk"}> : () -> ()
    %cst_20 = arith.constant dense<0.000000e+00> : vector<4x8x8xf32>
    %27 = tpu.matmul %22, %24, %cst_20 {dimension_numbers = #tpu.dot_dimension_numbers<[2], [2], [1], [1], [0, 0, 0, 1, 1, 1], [0], [0]>} : vector<4x8x8xf32>, vector<4x8x8xf32>, vector<4x8x8xf32> -> vector<4x8x8xf32>
    "tpu.trace_stop"() : () -> ()
    %cst_21 = arith.constant -9.99999986E+14 : f32
    %28 = vector.broadcast %cst_21 : f32 to vector<1x8xf32>
    %29 = arith.mulf %3, %28 : vector<1x8xf32>
    %30 = vector.shape_cast %29 : vector<1x8xf32> to vector<1x1x8xf32>
    %31 = vector.broadcast %30 : vector<1x1x8xf32> to vector<4x8x8xf32>
    %32 = arith.addf %27, %31 : vector<4x8x8xf32>
    %cst_22 = arith.constant dense<0xFF800000> : vector<4x8xf32>
    %33 = vector.multi_reduction <maximumf>, %32, %cst_22 [2] : vector<4x8x8xf32> to vector<4x8xf32>
    %34 = vector.shape_cast %33 : vector<4x8xf32> to vector<4x8x1xf32>
    %35 = vector.broadcast %34 : vector<4x8x1xf32> to vector<4x8x8xf32>
    %36 = arith.subf %32, %35 : vector<4x8x8xf32>
    %37 = math.exp %36 : vector<4x8x8xf32>
    %cst_23 = arith.constant dense<0.000000e+00> : vector<4x8xf32>
    %38 = vector.multi_reduction <add>, %37, %cst_23 [2] : vector<4x8x8xf32> to vector<4x8xf32>
    %39 = vector.shape_cast %38 : vector<4x8xf32> to vector<4x8x1xf32>
    %40 = tpu.reciprocal %39 : vector<4x8x1xf32> -> vector<4x8x1xf32>
    %41 = vector.broadcast %40 : vector<4x8x1xf32> to vector<4x8x8xf32>
    %42 = arith.mulf %37, %41 : vector<4x8x8xf32>
    "tpu.trace_start"() <{level = 10 : i32, message = "hqk,hkd->hqd"}> : () -> ()
    %cst_24 = arith.constant dense<0.000000e+00> : vector<4x8x8xf32>
    %43 = tpu.matmul %42, %26, %cst_24 {dimension_numbers = #tpu.dot_dimension_numbers<[2], [1], [1], [2], [0, 0, 0, 1, 1, 2], [0], [0]>} : vector<4x8x8xf32>, vector<4x8x8xf32>, vector<4x8x8xf32> -> vector<4x8x8xf32>
    "tpu.trace_stop"() : () -> ()
    %44 = tpu.transpose %43, [1, 0, 2] : vector<4x8x8xf32> -> vector<8x4x8xf32>
    %45 = vector.shape_cast %44 : vector<8x4x8xf32> to vector<8x32xf32>
    %c0_25 = arith.constant 0 : index
    %c0_26 = arith.constant 0 : index
    %46 = vector.load %arg9[%c0_25, %c0_26] : memref<32x32xf32, #tpu.memory_space<vmem>>, vector<32x32xf32>
    %cst_27 = arith.constant dense<0.000000e+00> : vector<8x32xf32>
    %47 = tpu.matmul %45, %46, %cst_27 {dimension_numbers = #tpu.dot_dimension_numbers<[1], [0], [0], [1], [0, 0, 1, 1], [], []>} : vector<8x32xf32>, vector<32x32xf32>, vector<8x32xf32> -> vector<8x32xf32>
    %c0_28 = arith.constant 0 : index
    %c0_29 = arith.constant 0 : index
    %48 = vector.load %arg10[%c0_28, %c0_29] : memref<1x32xf32, #tpu.memory_space<vmem>>, vector<1x32xf32>
    %49 = vector.broadcast %48 : vector<1x32xf32> to vector<8x32xf32>
    %50 = arith.addf %47, %49 : vector<8x32xf32>
    %51 = arith.addf %50, %1 : vector<8x32xf32>
    %c0_30 = arith.constant 0 : index
    %c0_31 = arith.constant 0 : index
    %52 = vector.load %arg11[%c0_30, %c0_31] : memref<1x32xf32, #tpu.memory_space<vmem>>, vector<1x32xf32>
    %c0_32 = arith.constant 0 : index
    %c0_33 = arith.constant 0 : index
    %53 = vector.load %arg12[%c0_32, %c0_33] : memref<1x32xf32, #tpu.memory_space<vmem>>, vector<1x32xf32>
    %cst_34 = arith.constant dense<0.000000e+00> : vector<8xf32>
    %54 = vector.multi_reduction <add>, %51, %cst_34 [1] : vector<8x32xf32> to vector<8xf32>
    %55 = vector.shape_cast %54 : vector<8xf32> to vector<8x1xf32>
    %cst_35 = arith.constant 3.200000e+01 : f32
    %56 = vector.broadcast %cst_35 : f32 to vector<8x1xf32>
    %57 = arith.divf %55, %56 : vector<8x1xf32>
    %58 = vector.broadcast %57 : vector<8x1xf32> to vector<8x32xf32>
    %59 = arith.subf %51, %58 : vector<8x32xf32>
    %60 = arith.mulf %59, %59 : vector<8x32xf32>
    %cst_36 = arith.constant dense<0.000000e+00> : vector<8xf32>
    %61 = vector.multi_reduction <add>, %60, %cst_36 [1] : vector<8x32xf32> to vector<8xf32>
    %62 = vector.shape_cast %61 : vector<8xf32> to vector<8x1xf32>
    %cst_37 = arith.constant 3.200000e+01 : f32
    %63 = vector.broadcast %cst_37 : f32 to vector<8x1xf32>
    %64 = arith.divf %62, %63 : vector<8x1xf32>
    %65 = vector.broadcast %57 : vector<8x1xf32> to vector<8x32xf32>
    %66 = arith.subf %51, %65 : vector<8x32xf32>
    %cst_38 = arith.constant 9.99999974E-6 : f32
    %67 = vector.broadcast %cst_38 : f32 to vector<8x1xf32>
    %68 = arith.addf %64, %67 : vector<8x1xf32>
    %69 = math.rsqrt %68 : vector<8x1xf32>
    %70 = vector.broadcast %69 : vector<8x1xf32> to vector<8x32xf32>
    %71 = arith.mulf %66, %70 : vector<8x32xf32>
    %72 = vector.broadcast %52 : vector<1x32xf32> to vector<8x32xf32>
    %73 = arith.mulf %71, %72 : vector<8x32xf32>
    %74 = vector.broadcast %53 : vector<1x32xf32> to vector<8x32xf32>
    %75 = arith.addf %73, %74 : vector<8x32xf32>
    %c0_39 = arith.constant 0 : index
    %c0_40 = arith.constant 0 : index
    %76 = vector.load %arg13[%c0_39, %c0_40] : memref<32x32xf32, #tpu.memory_space<vmem>>, vector<32x32xf32>
    %cst_41 = arith.constant dense<0.000000e+00> : vector<8x32xf32>
    %77 = tpu.matmul %75, %76, %cst_41 {dimension_numbers = #tpu.dot_dimension_numbers<[1], [0], [0], [1], [0, 0, 1, 1], [], []>} : vector<8x32xf32>, vector<32x32xf32>, vector<8x32xf32> -> vector<8x32xf32>
    %c0_42 = arith.constant 0 : index
    %c0_43 = arith.constant 0 : index
    %78 = vector.load %arg14[%c0_42, %c0_43] : memref<1x32xf32, #tpu.memory_space<vmem>>, vector<1x32xf32>
    %79 = vector.broadcast %78 : vector<1x32xf32> to vector<8x32xf32>
    %80 = arith.addf %77, %79 : vector<8x32xf32>
    %cst_44 = arith.constant 5.000000e-01 : f32
    %81 = vector.broadcast %cst_44 : f32 to vector<8x32xf32>
    %82 = arith.mulf %81, %80 : vector<8x32xf32>
    %cst_45 = arith.constant 0.707106769 : f32
    %83 = vector.broadcast %cst_45 : f32 to vector<8x32xf32>
    %84 = arith.mulf %80, %83 : vector<8x32xf32>
    %85 = math.erf %84 : vector<8x32xf32>
    %cst_46 = arith.constant 1.000000e+00 : f32
    %86 = vector.broadcast %cst_46 : f32 to vector<8x32xf32>
    %87 = arith.addf %86, %85 : vector<8x32xf32>
    %88 = arith.mulf %82, %87 : vector<8x32xf32>
    %c0_47 = arith.constant 0 : index
    %c0_48 = arith.constant 0 : index
    %89 = vector.load %arg15[%c0_47, %c0_48] : memref<32x32xf32, #tpu.memory_space<vmem>>, vector<32x32xf32>
    %cst_49 = arith.constant dense<0.000000e+00> : vector<8x32xf32>
    %90 = tpu.matmul %88, %89, %cst_49 {dimension_numbers = #tpu.dot_dimension_numbers<[1], [0], [0], [1], [0, 0, 1, 1], [], []>} : vector<8x32xf32>, vector<32x32xf32>, vector<8x32xf32> -> vector<8x32xf32>
    %c0_50 = arith.constant 0 : index
    %c0_51 = arith.constant 0 : index
    %91 = vector.load %arg16[%c0_50, %c0_51] : memref<1x32xf32, #tpu.memory_space<vmem>>, vector<1x32xf32>
    %92 = vector.broadcast %91 : vector<1x32xf32> to vector<8x32xf32>
    %93 = arith.addf %90, %92 : vector<8x32xf32>
    %94 = arith.addf %93, %75 : vector<8x32xf32>
    %c0_52 = arith.constant 0 : index
    %c0_53 = arith.constant 0 : index
    %95 = vector.load %arg17[%c0_52, %c0_53] : memref<1x32xf32, #tpu.memory_space<vmem>>, vector<1x32xf32>
    %c0_54 = arith.constant 0 : index
    %c0_55 = arith.constant 0 : index
    %96 = vector.load %arg18[%c0_54, %c0_55] : memref<1x32xf32, #tpu.memory_space<vmem>>, vector<1x32xf32>
    %cst_56 = arith.constant dense<0.000000e+00> : vector<8xf32>
    %97 = vector.multi_reduction <add>, %94, %cst_56 [1] : vector<8x32xf32> to vector<8xf32>
    %98 = vector.shape_cast %97 : vector<8xf32> to vector<8x1xf32>
    %cst_57 = arith.constant 3.200000e+01 : f32
    %99 = vector.broadcast %cst_57 : f32 to vector<8x1xf32>
    %100 = arith.divf %98, %99 : vector<8x1xf32>
    %101 = vector.broadcast %100 : vector<8x1xf32> to vector<8x32xf32>
    %102 = arith.subf %94, %101 : vector<8x32xf32>
    %103 = arith.mulf %102, %102 : vector<8x32xf32>
    %cst_58 = arith.constant dense<0.000000e+00> : vector<8xf32>
    %104 = vector.multi_reduction <add>, %103, %cst_58 [1] : vector<8x32xf32> to vector<8xf32>
    %105 = vector.shape_cast %104 : vector<8xf32> to vector<8x1xf32>
    %cst_59 = arith.constant 3.200000e+01 : f32
    %106 = vector.broadcast %cst_59 : f32 to vector<8x1xf32>
    %107 = arith.divf %105, %106 : vector<8x1xf32>
    %108 = vector.broadcast %100 : vector<8x1xf32> to vector<8x32xf32>
    %109 = arith.subf %94, %108 : vector<8x32xf32>
    %cst_60 = arith.constant 9.99999974E-6 : f32
    %110 = vector.broadcast %cst_60 : f32 to vector<8x1xf32>
    %111 = arith.addf %107, %110 : vector<8x1xf32>
    %112 = math.rsqrt %111 : vector<8x1xf32>
    %113 = vector.broadcast %112 : vector<8x1xf32> to vector<8x32xf32>
    %114 = arith.mulf %109, %113 : vector<8x32xf32>
    %115 = vector.broadcast %95 : vector<1x32xf32> to vector<8x32xf32>
    %116 = arith.mulf %114, %115 : vector<8x32xf32>
    %117 = vector.broadcast %96 : vector<1x32xf32> to vector<8x32xf32>
    %118 = arith.addf %116, %117 : vector<8x32xf32>
    %c0_61 = arith.constant 0 : index
    %c0_62 = arith.constant 0 : index
    %c0_63 = arith.constant 0 : index
    %119 = vector.load %arg19[%c0_61, %c0_62, %c0_63] : memref<1x8x32xf32, #tpu.memory_space<vmem>>, vector<1x8x32xf32>
    %120 = vector.shape_cast %119 : vector<1x8x32xf32> to vector<8x32xf32>
    %121 = vector.shape_cast %118 : vector<8x32xf32> to vector<1x8x32xf32>
    tpu.vector_store %arg19[%c0_61, %c0_62, %c0_63], %121 {strides = array<i32>} : memref<1x8x32xf32, #tpu.memory_space<vmem>>, vector<1x8x32xf32>,
    return
  }
  func.func @transform_0(%arg0: i32) -> (i32, i32, i32) {
    %c0_i32 = arith.constant 0 : i32
    %c0_i32_0 = arith.constant 0 : i32
    %c0_i32_1 = arith.constant 0 : i32
    return %arg0, %c0_i32, %c0_i32_0 : i32, i32, i32
  }
  func.func @transform_1(%arg0: i32) -> (i32, i32, i32) {
    %c0_i32 = arith.constant 0 : i32
    %c0_i32_0 = arith.constant 0 : i32
    %c0_i32_1 = arith.constant 0 : i32
    return %arg0, %c0_i32, %c0_i32_0 : i32, i32, i32
  }
  func.func @transform_2(%arg0: i32) -> (i32, i32) {
    %c0_i32 = arith.constant 0 : i32
    %c0_i32_0 = arith.constant 0 : i32
    %c0_i32_1 = arith.constant 0 : i32
    return %c0_i32, %c0_i32_0 : i32, i32
  }
  func.func @transform_3(%arg0: i32) -> (i32, i32) {
    %c0_i32 = arith.constant 0 : i32
    %c0_i32_0 = arith.constant 0 : i32
    %c0_i32_1 = arith.constant 0 : i32
    return %c0_i32, %c0_i32_0 : i32, i32
  }
  func.func @transform_4(%arg0: i32) -> (i32, i32) {
    %c0_i32 = arith.constant 0 : i32
    %c0_i32_0 = arith.constant 0 : i32
    %c0_i32_1 = arith.constant 0 : i32
    return %c0_i32, %c0_i32_0 : i32, i32
  }
  func.func @transform_5(%arg0: i32) -> (i32, i32) {
    %c0_i32 = arith.constant 0 : i32
    %c0_i32_0 = arith.constant 0 : i32
    %c0_i32_1 = arith.constant 0 : i32
    return %c0_i32, %c0_i32_0 : i32, i32
  }
  func.func @transform_6(%arg0: i32) -> (i32, i32) {
    %c0_i32 = arith.constant 0 : i32
    %c0_i32_0 = arith.constant 0 : i32
    %c0_i32_1 = arith.constant 0 : i32
    return %c0_i32, %c0_i32_0 : i32, i32
  }
  func.func @transform_7(%arg0: i32) -> (i32, i32) {
    %c0_i32 = arith.constant 0 : i32
    %c0_i32_0 = arith.constant 0 : i32
    %c0_i32_1 = arith.constant 0 : i32
    return %c0_i32, %c0_i32_0 : i32, i32
  }
  func.func @transform_8(%arg0: i32) -> (i32, i32) {
    %c0_i32 = arith.constant 0 : i32
    %c0_i32_0 = arith.constant 0 : i32
    %c0_i32_1 = arith.constant 0 : i32
    return %c0_i32, %c0_i32_0 : i32, i32
  }
  func.func @transform_9(%arg0: i32) -> (i32, i32) {
    %c0_i32 = arith.constant 0 : i32
    %c0_i32_0 = arith.constant 0 : i32
    %c0_i32_1 = arith.constant 0 : i32
    return %c0_i32, %c0_i32_0 : i32, i32
  }
  func.func @transform_10(%arg0: i32) -> (i32, i32) {
    %c0_i32 = arith.constant 0 : i32
    %c0_i32_0 = arith.constant 0 : i32
    %c0_i32_1 = arith.constant 0 : i32
    return %c0_i32, %c0_i32_0 : i32, i32
  }
  func.func @transform_11(%arg0: i32) -> (i32, i32) {
    %c0_i32 = arith.constant 0 : i32
    %c0_i32_0 = arith.constant 0 : i32
    %c0_i32_1 = arith.constant 0 : i32
    return %c0_i32, %c0_i32_0 : i32, i32
  }
  func.func @transform_12(%arg0: i32) -> (i32, i32) {
    %c0_i32 = arith.constant 0 : i32
    %c0_i32_0 = arith.constant 0 : i32
    %c0_i32_1 = arith.constant 0 : i32
    return %c0_i32, %c0_i32_0 : i32, i32
  }
  func.func @transform_13(%arg0: i32) -> (i32, i32) {
    %c0_i32 = arith.constant 0 : i32
    %c0_i32_0 = arith.constant 0 : i32
    %c0_i32_1 = arith.constant 0 : i32
    return %c0_i32, %c0_i32_0 : i32, i32
  }
  func.func @transform_14(%arg0: i32) -> (i32, i32) {
    %c0_i32 = arith.constant 0 : i32
    %c0_i32_0 = arith.constant 0 : i32
    %c0_i32_1 = arith.constant 0 : i32
    return %c0_i32, %c0_i32_0 : i32, i32
  }
  func.func @transform_15(%arg0: i32) -> (i32, i32) {
    %c0_i32 = arith.constant 0 : i32
    %c0_i32_0 = arith.constant 0 : i32
    %c0_i32_1 = arith.constant 0 : i32
    return %c0_i32, %c0_i32_0 : i32, i32
  }
  func.func @transform_16(%arg0: i32) -> (i32, i32) {
    %c0_i32 = arith.constant 0 : i32
    %c0_i32_0 = arith.constant 0 : i32
    %c0_i32_1 = arith.constant 0 : i32
    return %c0_i32, %c0_i32_0 : i32, i32
  }
  func.func @transform_17(%arg0: i32) -> (i32, i32) {
    %c0_i32 = arith.constant 0 : i32
    %c0_i32_0 = arith.constant 0 : i32
    %c0_i32_1 = arith.constant 0 : i32
    return %c0_i32, %c0_i32_0 : i32, i32
  }
  func.func @transform_18(%arg0: i32) -> (i32, i32, i32) {
    %c0_i32 = arith.constant 0 : i32
    %c0_i32_0 = arith.constant 0 : i32
    %c0_i32_1 = arith.constant 0 : i32
    return %arg0, %c0_i32, %c0_i32_0 : i32, i32, i32
  }
}

</mosaic_0001>

<llo_original>
// kernel: tpu_custom_call.1
$region0: #{tpu_custom_call.1}
  #allocation0 [shape = 'u32[]', space=smem, size = 0x4, offset = 0x4, fixed_abs, tag = 'smem constant byte address 0x4 - core index']
  #allocation1 [shape = 'u32[144,128]{1,0:T(1,128)}', space=vmem, size = 0x12000, scoped, tag = 'internal scratch']
  %s0 = inlined_call_operand.hbm [shape: f32[2,8,32], index: 0, kind: input, shape index: {}]
  %s1 = inlined_call_operand.vmem [shape: f32[2,1,8], index: 1, kind: input, shape index: {}]
  %s2 = inlined_call_operand.hbm [shape: f32[32,32], index: 2, kind: input, shape index: {}]
  %s3 = inlined_call_operand.vmem [shape: f32[1,32], index: 3, kind: input, shape index: {}]
  %s4 = inlined_call_operand.hbm [shape: f32[32,32], index: 4, kind: input, shape index: {}]
  %s5 = inlined_call_operand.vmem [shape: f32[1,32], index: 5, kind: input, shape index: {}]
  %s6 = inlined_call_operand.hbm [shape: f32[32,32], index: 6, kind: input, shape index: {}]
  %s7 = inlined_call_operand.vmem [shape: f32[1,32], index: 7, kind: input, shape index: {}]
  %s8 = inlined_call_operand.hbm [shape: f32[32,32], index: 8, kind: input, shape index: {}]
  %s9 = inlined_call_operand.vmem [shape: f32[1,32], index: 9, kind: input, shape index: {}]
  %s10 = inlined_call_operand.vmem [shape: f32[1,32], index: 10, kind: input, shape index: {}]
  %s11 = inlined_call_operand.vmem [shape: f32[1,32], index: 11, kind: input, shape index: {}]
  %s12 = inlined_call_operand.vmem [shape: f32[32,32], index: 12, kind: input, shape index: {}]
  %s13 = inlined_call_operand.vmem [shape: f32[1,32], index: 13, kind: input, shape index: {}]
  %s14 = inlined_call_operand.hbm [shape: f32[32,32], index: 14, kind: input, shape index: {}]
  %s15 = inlined_call_operand.vmem [shape: f32[1,32], index: 15, kind: input, shape index: {}]
  %s16 = inlined_call_operand.vmem [shape: f32[1,32], index: 16, kind: input, shape index: {}]
  %s17 = inlined_call_operand.vmem [shape: f32[1,32], index: 17, kind: input, shape index: {}]
  %s18 = inlined_call_operand.hbm [shape: f32[2,8,32], index: 18, kind: output, shape index: {}]
  %s19 = sld [smem:[#allocation0]]
  $region129: #{tpu_custom_call.1} parent=0
    _
  %s21 = ssub.s32 1, %s19
  %s22 = scalar_select 0, %s21, %s19
  $region1: #{tpu_custom_call.1} parent=0
    #allocation2 [shape = 'u8[8192]{0}', space=vmem, size = 0x2000, scoped, tag = 'input window, operand 0']
    #allocation3 [shape = 's32[2]{0}', space=sflag, size = 0x8, scoped, tag = 'scoped memory for tpu_custom_call.1']
    #allocation4 [shape = 's32[2]{0}', space=sflag, size = 0x8, scoped, tag = 'scoped memory for tpu_custom_call.1']
    #allocation5 [shape = 'u8[16384]{0}', space=vmem, size = 0x4000, scoped, tag = 'input window, operand 2, single buffered']
    #allocation6 [shape = 's32[1]{0}', space=sflag, size = 0x4, scoped, tag = 'scoped memory for tpu_custom_call.1']
    #allocation7 [shape = 'u8[16384]{0}', space=vmem, size = 0x4000, scoped, tag = 'input window, operand 4, single buffered']
    #allocation8 [shape = 'u8[16384]{0}', space=vmem, size = 0x4000, scoped, tag = 'input window, operand 6, single buffered']
    #allocation9 [shape = 's32[1]{0}', space=sflag, size = 0x4, scoped, tag = 'scoped memory for tpu_custom_call.1']
    #allocation10 [shape = 'u8[16384]{0}', space=vmem, size = 0x4000, scoped, tag = 'input window, operand 8, single buffered']
    #allocation11 [shape = 'u8[16384]{0}', space=vmem, size = 0x4000, scoped, tag = 'input window, operand 14, single buffered']
    #allocation12 [shape = 's32[1]{0}', space=sflag, size = 0x4, scoped, tag = 'scoped memory for tpu_custom_call.1']
    #allocation13 [shape = 'u8[8192]{0}', space=vmem, size = 0x2000, scoped, tag = 'output window, operand 0']
    %23 = vsyncpa [#allocation3], 0
    %s24 = scalar_lea.sflag [#allocation3], 1
    %25 = vsyncpa %s24, 0
    %26 = vsyncpa [#allocation6], 0
    %27 = vsyncpa [#allocation9], 0
    %28 = vsyncpa [#allocation12], 0
    %29 = vsyncpa [#allocation4], 0
    %s30 = scalar_lea.sflag [#allocation4], 1
    %31 = vsyncpa %s30, 0
    loop: start=0, step=1, limit=4
    $region2: #{tpu_custom_call.1} parent=1 // loop_pre_header
      _
    $region3: #{tpu_custom_call.1} parent=1 // loop_header
      %s33 = sphi 0, %s37
      %p34 = scmp.ge.s32.totalorder %s33, 4
      %s43 = sphi 0, %s45
      %s46 = sphi 0, %s43
      %s47 = sphi 0, %s46
      %s63 = sphi 0, %s47
      %s69 = sphi 0, %s71
      %s72 = sphi 0, %s69
      %s73 = sphi 0, %s72
      %s89 = sphi 0, %s73
      %s93 = sphi 0, %s93
      %s95 = sphi 0, %s93
      %s96 = sphi 0, %s95
      %s110 = sphi 0, %s96
      %s114 = sphi 0, %s114
      %s116 = sphi 0, %s114
      %s117 = sphi 0, %s116
      %s131 = sphi 0, %s117
      %s135 = sphi 0, %s135
      %s137 = sphi 0, %s135
      %s138 = sphi 0, %s137
      %s152 = sphi 0, %s138
      %s156 = sphi 0, %s156
      %s158 = sphi 0, %s156
      %s159 = sphi 0, %s158
      %s173 = sphi 0, %s159
      %s177 = sphi 0, %s177
      %s179 = sphi 0, %s177
      %s180 = sphi 0, %s179
      %s194 = sphi 0, %s180
      %s198 = sphi 0, %s198
      %s200 = sphi 0, %s198
      %s201 = sphi 0, %s200
      %s215 = sphi 0, %s201
      %s219 = sphi 0, %s219
      %s221 = sphi 0, %s219
      %s222 = sphi 0, %s221
      %s236 = sphi 0, %s222
      %s240 = sphi 0, %s240
      %s242 = sphi 0, %s240
      %s243 = sphi 0, %s242
      %s257 = sphi 0, %s243
      %s261 = sphi 0, %s261
      %s263 = sphi 0, %s261
      %s264 = sphi 0, %s263
      %s278 = sphi 0, %s264
      %s282 = sphi 0, %s282
      %s284 = sphi 0, %s282
      %s285 = sphi 0, %s284
      %s299 = sphi 0, %s285
      %s303 = sphi 0, %s303
      %s305 = sphi 0, %s303
      %s306 = sphi 0, %s305
      %s320 = sphi 0, %s306
      %s324 = sphi 0, %s324
      %s326 = sphi 0, %s324
      %s327 = sphi 0, %s326
      %s341 = sphi 0, %s327
      %s345 = sphi 0, %s345
      %s347 = sphi 0, %s345
      %s348 = sphi 0, %s347
      %s362 = sphi 0, %s348
      %s366 = sphi 0, %s366
      %s368 = sphi 0, %s366
      %s369 = sphi 0, %s368
      %s383 = sphi 0, %s369
      %s387 = sphi 0, %s387
      %s389 = sphi 0, %s387
      %s390 = sphi 0, %s389
      %s404 = sphi 0, %s390
      %s408 = sphi 0, %s408
      %s410 = sphi 0, %s408
      %s411 = sphi 0, %s410
      %s425 = sphi 0, %s411
      %s431 = sphi 0, %s433
      %s434 = sphi 0, %s431
      %s435 = sphi 0, %s434
      %s451 = sphi 0, %s435
    $region4: #{tpu_custom_call.1} parent=1 // loop_header_branch
      %36 = sbr.rel (%p34) target = $region8
    $region5: #{tpu_custom_call.1} parent=1 // loop_body
      %s38 = ssub.s32 %s33, 1
      %s39 = ssub.s32 %s33, 2
      %s40 = sadd.s32 %s33, 1
      %s41 = ssub.s32 %s33, %s40
      %p42 = scmp.eq.s32.totalorder %s41, 0
      %s44 = sadd.s32 %s43, 1
      %s45 = scalar_select %p42, %s43, %s44
      %p48 = pneg %p42
      %p49 = scmp.eq.s32.totalorder %s33, 1
      %p50 = por %p48, %p49
      %p51 = scmp.ne.s32.totalorder %s43, %s46
      %p52 = scmp.eq.s32.totalorder %s33, 0
      %p53 = por %p51, %p52
      %p54 = scmp.ne.s32.totalorder %s43, %s46
      %p55 = scmp.eq.s32.totalorder %s38, 1
      %p56 = por %p54, %p55
      %p57 = scmp.ne.s32.totalorder %s46, %s47
      %p58 = scmp.eq.s32.totalorder %s38, 0
      %p59 = por %p57, %p58
      %p60 = scmp.ne.s32.totalorder %s46, %s47
      %p61 = scmp.eq.s32.totalorder %s39, 1
      %p62 = por %p60, %p61
      %p64 = scmp.ne.s32.totalorder %s47, %s63
      %p65 = scmp.eq.s32.totalorder %s39, 0
      %p66 = por %p64, %p65
      %s67 = ssub.s32 %s33, %s40
      %p68 = scmp.eq.s32.totalorder %s67, 0
      %s70 = sadd.s32 %s69, 1
      %s71 = scalar_select %p68, %s69, %s70
      %p74 = pneg %p68
      %p75 = scmp.eq.s32.totalorder %s33, 1
      %p76 = por %p74, %p75
      %p77 = scmp.ne.s32.totalorder %s69, %s72
      %p78 = scmp.eq.s32.totalorder %s33, 0
      %p79 = por %p77, %p78
      %p80 = scmp.ne.s32.totalorder %s69, %s72
      %p81 = scmp.eq.s32.totalorder %s38, 1
      %p82 = por %p80, %p81
      %p83 = scmp.ne.s32.totalorder %s72, %s73
      %p84 = scmp.eq.s32.totalorder %s38, 0
      %p85 = por %p83, %p84
      %p86 = scmp.ne.s32.totalorder %s72, %s73
      %p87 = scmp.eq.s32.totalorder %s39, 1
      %p88 = por %p86, %p87
      %p90 = scmp.ne.s32.totalorder %s73, %s89
      %p91 = scmp.eq.s32.totalorder %s39, 0
      %p92 = por %p90, %p91
      %s94 = sadd.s32 %s93, 1
      %p97 = scmp.eq.s32.totalorder %s33, 1
      %p98 = scmp.ne.s32.totalorder %s93, %s95
      %p99 = scmp.eq.s32.totalorder %s33, 0
      %p100 = por %p98, %p99
      %p101 = scmp.ne.s32.totalorder %s93, %s95
      %p102 = scmp.eq.s32.totalorder %s38, 1
      %p103 = por %p101, %p102
      %p104 = scmp.ne.s32.totalorder %s95, %s96
      %p105 = scmp.eq.s32.totalorder %s38, 0
      %p106 = por %p104, %p105
      %p107 = scmp.ne.s32.totalorder %s95, %s96
      %p108 = scmp.eq.s32.totalorder %s39, 1
      %p109 = por %p107, %p108
      %p111 = scmp.ne.s32.totalorder %s96, %s110
      %p112 = scmp.eq.s32.totalorder %s39, 0
      %p113 = por %p111, %p112
      %s115 = sadd.s32 %s114, 1
      %p118 = scmp.eq.s32.totalorder %s33, 1
      %p119 = scmp.ne.s32.totalorder %s114, %s116
      %p120 = scmp.eq.s32.totalorder %s33, 0
      %p121 = por %p119, %p120
      %p122 = scmp.ne.s32.totalorder %s114, %s116
      %p123 = scmp.eq.s32.totalorder %s38, 1
      %p124 = por %p122, %p123
      %p125 = scmp.ne.s32.totalorder %s116, %s117
      %p126 = scmp.eq.s32.totalorder %s38, 0
      %p127 = por %p125, %p126
      %p128 = scmp.ne.s32.totalorder %s116, %s117
      %p129 = scmp.eq.s32.totalorder %s39, 1
      %p130 = por %p128, %p129
      %p132 = scmp.ne.s32.totalorder %s117, %s131
      %p133 = scmp.eq.s32.totalorder %s39, 0
      %p134 = por %p132, %p133
      %s136 = sadd.s32 %s135, 1
      %p139 = scmp.eq.s32.totalorder %s33, 1
      %p140 = scmp.ne.s32.totalorder %s135, %s137
      %p141 = scmp.eq.s32.totalorder %s33, 0
      %p142 = por %p140, %p141
      %p143 = scmp.ne.s32.totalorder %s135, %s137
      %p144 = scmp.eq.s32.totalorder %s38, 1
      %p145 = por %p143, %p144
      %p146 = scmp.ne.s32.totalorder %s137, %s138
      %p147 = scmp.eq.s32.totalorder %s38, 0
      %p148 = por %p146, %p147
      %p149 = scmp.ne.s32.totalorder %s137, %s138
      %p150 = scmp.eq.s32.totalorder %s39, 1
      %p151 = por %p149, %p150
      %p153 = scmp.ne.s32.totalorder %s138, %s152
      %p154 = scmp.eq.s32.totalorder %s39, 0
      %p155 = por %p153, %p154
      %s157 = sadd.s32 %s156, 1
      %p160 = scmp.eq.s32.totalorder %s33, 1
      %p161 = scmp.ne.s32.totalorder %s156, %s158
      %p162 = scmp.eq.s32.totalorder %s33, 0
      %p163 = por %p161, %p162
      %p164 = scmp.ne.s32.totalorder %s156, %s158
      %p165 = scmp.eq.s32.totalorder %s38, 1
      %p166 = por %p164, %p165
      %p167 = scmp.ne.s32.totalorder %s158, %s159
      %p168 = scmp.eq.s32.totalorder %s38, 0
      %p169 = por %p167, %p168
      %p170 = scmp.ne.s32.totalorder %s158, %s159
      %p171 = scmp.eq.s32.totalorder %s39, 1
      %p172 = por %p170, %p171
      %p174 = scmp.ne.s32.totalorder %s159, %s173
      %p175 = scmp.eq.s32.totalorder %s39, 0
      %p176 = por %p174, %p175
      %s178 = sadd.s32 %s177, 1
      %p181 = scmp.eq.s32.totalorder %s33, 1
      %p182 = scmp.ne.s32.totalorder %s177, %s179
      %p183 = scmp.eq.s32.totalorder %s33, 0
      %p184 = por %p182, %p183
      %p185 = scmp.ne.s32.totalorder %s177, %s179
      %p186 = scmp.eq.s32.totalorder %s38, 1
      %p187 = por %p185, %p186
      %p188 = scmp.ne.s32.totalorder %s179, %s180
      %p189 = scmp.eq.s32.totalorder %s38, 0
      %p190 = por %p188, %p189
      %p191 = scmp.ne.s32.totalorder %s179, %s180
      %p192 = scmp.eq.s32.totalorder %s39, 1
      %p193 = por %p191, %p192
      %p195 = scmp.ne.s32.totalorder %s180, %s194
      %p196 = scmp.eq.s32.totalorder %s39, 0
      %p197 = por %p195, %p196
      %s199 = sadd.s32 %s198, 1
      %p202 = scmp.eq.s32.totalorder %s33, 1
      %p203 = scmp.ne.s32.totalorder %s198, %s200
      %p204 = scmp.eq.s32.totalorder %s33, 0
      %p205 = por %p203, %p204
      %p206 = scmp.ne.s32.totalorder %s198, %s200
      %p207 = scmp.eq.s32.totalorder %s38, 1
      %p208 = por %p206, %p207
      %p209 = scmp.ne.s32.totalorder %s200, %s201
      %p210 = scmp.eq.s32.totalorder %s38, 0
      %p211 = por %p209, %p210
      %p212 = scmp.ne.s32.totalorder %s200, %s201
      %p213 = scmp.eq.s32.totalorder %s39, 1
      %p214 = por %p212, %p213
      %p216 = scmp.ne.s32.totalorder %s201, %s215
      %p217 = scmp.eq.s32.totalorder %s39, 0
      %p218 = por %p216, %p217
      %s220 = sadd.s32 %s219, 1
      %p223 = scmp.eq.s32.totalorder %s33, 1
      %p224 = scmp.ne.s32.totalorder %s219, %s221
      %p225 = scmp.eq.s32.totalorder %s33, 0
      %p226 = por %p224, %p225
      %p227 = scmp.ne.s32.totalorder %s219, %s221
      %p228 = scmp.eq.s32.totalorder %s38, 1
      %p229 = por %p227, %p228
      %p230 = scmp.ne.s32.totalorder %s221, %s222
      %p231 = scmp.eq.s32.totalorder %s38, 0
      %p232 = por %p230, %p231
      %p233 = scmp.ne.s32.totalorder %s221, %s222
      %p234 = scmp.eq.s32.totalorder %s39, 1
      %p235 = por %p233, %p234
      %p237 = scmp.ne.s32.totalorder %s222, %s236
      %p238 = scmp.eq.s32.totalorder %s39, 0
      %p239 = por %p237, %p238
      %s241 = sadd.s32 %s240, 1
      %p244 = scmp.eq.s32.totalorder %s33, 1
      %p245 = scmp.ne.s32.totalorder %s240, %s242
      %p246 = scmp.eq.s32.totalorder %s33, 0
      %p247 = por %p245, %p246
      %p248 = scmp.ne.s32.totalorder %s240, %s242
      %p249 = scmp.eq.s32.totalorder %s38, 1
      %p250 = por %p248, %p249
      %p251 = scmp.ne.s32.totalorder %s242, %s243
      %p252 = scmp.eq.s32.totalorder %s38, 0
      %p253 = por %p251, %p252
      %p254 = scmp.ne.s32.totalorder %s242, %s243
      %p255 = scmp.eq.s32.totalorder %s39, 1
      %p256 = por %p254, %p255
      %p258 = scmp.ne.s32.totalorder %s243, %s257
      %p259 = scmp.eq.s32.totalorder %s39, 0
      %p260 = por %p258, %p259
      %s262 = sadd.s32 %s261, 1
      %p265 = scmp.eq.s32.totalorder %s33, 1
      %p266 = scmp.ne.s32.totalorder %s261, %s263
      %p267 = scmp.eq.s32.totalorder %s33, 0
      %p268 = por %p266, %p267
      %p269 = scmp.ne.s32.totalorder %s261, %s263
      %p270 = scmp.eq.s32.totalorder %s38, 1
      %p271 = por %p269, %p270
      %p272 = scmp.ne.s32.totalorder %s263, %s264
      %p273 = scmp.eq.s32.totalorder %s38, 0
      %p274 = por %p272, %p273
      %p275 = scmp.ne.s32.totalorder %s263, %s264
      %p276 = scmp.eq.s32.totalorder %s39, 1
      %p277 = por %p275, %p276
      %p279 = scmp.ne.s32.totalorder %s264, %s278
      %p280 = scmp.eq.s32.totalorder %s39, 0
      %p281 = por %p279, %p280
      %s283 = sadd.s32 %s282, 1
      %p286 = scmp.eq.s32.totalorder %s33, 1
      %p287 = scmp.ne.s32.totalorder %s282, %s284
      %p288 = scmp.eq.s32.totalorder %s33, 0
      %p289 = por %p287, %p288
      %p290 = scmp.ne.s32.totalorder %s282, %s284
      %p291 = scmp.eq.s32.totalorder %s38, 1
      %p292 = por %p290, %p291
      %p293 = scmp.ne.s32.totalorder %s284, %s285
      %p294 = scmp.eq.s32.totalorder %s38, 0
      %p295 = por %p293, %p294
      %p296 = scmp.ne.s32.totalorder %s284, %s285
      %p297 = scmp.eq.s32.totalorder %s39, 1
      %p298 = por %p296, %p297
      %p300 = scmp.ne.s32.totalorder %s285, %s299
      %p301 = scmp.eq.s32.totalorder %s39, 0
      %p302 = por %p300, %p301
      %s304 = sadd.s32 %s303, 1
      %p307 = scmp.eq.s32.totalorder %s33, 1
      %p308 = scmp.ne.s32.totalorder %s303, %s305
      %p309 = scmp.eq.s32.totalorder %s33, 0
      %p310 = por %p308, %p309
      %p311 = scmp.ne.s32.totalorder %s303, %s305
      %p312 = scmp.eq.s32.totalorder %s38, 1
      %p313 = por %p311, %p312
      %p314 = scmp.ne.s32.totalorder %s305, %s306
      %p315 = scmp.eq.s32.totalorder %s38, 0
      %p316 = por %p314, %p315
      %p317 = scmp.ne.s32.totalorder %s305, %s306
      %p318 = scmp.eq.s32.totalorder %s39, 1
      %p319 = por %p317, %p318
      %p321 = scmp.ne.s32.totalorder %s306, %s320
      %p322 = scmp.eq.s32.totalorder %s39, 0
      %p323 = por %p321, %p322
      %s325 = sadd.s32 %s324, 1
      %p328 = scmp.eq.s32.totalorder %s33, 1
      %p329 = scmp.ne.s32.totalorder %s324, %s326
      %p330 = scmp.eq.s32.totalorder %s33, 0
      %p331 = por %p329, %p330
      %p332 = scmp.ne.s32.totalorder %s324, %s326
      %p333 = scmp.eq.s32.totalorder %s38, 1
      %p334 = por %p332, %p333
      %p335 = scmp.ne.s32.totalorder %s326, %s327
      %p336 = scmp.eq.s32.totalorder %s38, 0
      %p337 = por %p335, %p336
      %p338 = scmp.ne.s32.totalorder %s326, %s327
      %p339 = scmp.eq.s32.totalorder %s39, 1
      %p340 = por %p338, %p339
      %p342 = scmp.ne.s32.totalorder %s327, %s341
      %p343 = scmp.eq.s32.totalorder %s39, 0
      %p344 = por %p342, %p343
      %s346 = sadd.s32 %s345, 1
      %p349 = scmp.eq.s32.totalorder %s33, 1
      %p350 = scmp.ne.s32.totalorder %s345, %s347
      %p351 = scmp.eq.s32.totalorder %s33, 0
      %p352 = por %p350, %p351
      %p353 = scmp.ne.s32.totalorder %s345, %s347
      %p354 = scmp.eq.s32.totalorder %s38, 1
      %p355 = por %p353, %p354
      %p356 = scmp.ne.s32.totalorder %s347, %s348
      %p357 = scmp.eq.s32.totalorder %s38, 0
      %p358 = por %p356, %p357
      %p359 = scmp.ne.s32.totalorder %s347, %s348
      %p360 = scmp.eq.s32.totalorder %s39, 1
      %p361 = por %p359, %p360
      %p363 = scmp.ne.s32.totalorder %s348, %s362
      %p364 = scmp.eq.s32.totalorder %s39, 0
      %p365 = por %p363, %p364
      %s367 = sadd.s32 %s366, 1
      %p370 = scmp.eq.s32.totalorder %s33, 1
      %p371 = scmp.ne.s32.totalorder %s366, %s368
      %p372 = scmp.eq.s32.totalorder %s33, 0
      %p373 = por %p371, %p372
      %p374 = scmp.ne.s32.totalorder %s366, %s368
      %p375 = scmp.eq.s32.totalorder %s38, 1
      %p376 = por %p374, %p375
      %p377 = scmp.ne.s32.totalorder %s368, %s369
      %p378 = scmp.eq.s32.totalorder %s38, 0
      %p379 = por %p377, %p378
      %p380 = scmp.ne.s32.totalorder %s368, %s369
      %p381 = scmp.eq.s32.totalorder %s39, 1
      %p382 = por %p380, %p381
      %p384 = scmp.ne.s32.totalorder %s369, %s383
      %p385 = scmp.eq.s32.totalorder %s39, 0
      %p386 = por %p384, %p385
      %s388 = sadd.s32 %s387, 1
      %p391 = scmp.eq.s32.totalorder %s33, 1
      %p392 = scmp.ne.s32.totalorder %s387, %s389
      %p393 = scmp.eq.s32.totalorder %s33, 0
      %p394 = por %p392, %p393
      %p395 = scmp.ne.s32.totalorder %s387, %s389
      %p396 = scmp.eq.s32.totalorder %s38, 1
      %p397 = por %p395, %p396
      %p398 = scmp.ne.s32.totalorder %s389, %s390
      %p399 = scmp.eq.s32.totalorder %s38, 0
      %p400 = por %p398, %p399
      %p401 = scmp.ne.s32.totalorder %s389, %s390
      %p402 = scmp.eq.s32.totalorder %s39, 1
      %p403 = por %p401, %p402
      %p405 = scmp.ne.s32.totalorder %s390, %s404
      %p406 = scmp.eq.s32.totalorder %s39, 0
      %p407 = por %p405, %p406
      %s409 = sadd.s32 %s408, 1
      %p412 = scmp.eq.s32.totalorder %s33, 1
      %p413 = scmp.ne.s32.totalorder %s408, %s410
      %p414 = scmp.eq.s32.totalorder %s33, 0
      %p415 = por %p413, %p414
      %p416 = scmp.ne.s32.totalorder %s408, %s410
      %p417 = scmp.eq.s32.totalorder %s38, 1
      %p418 = por %p416, %p417
      %p419 = scmp.ne.s32.totalorder %s410, %s411
      %p420 = scmp.eq.s32.totalorder %s38, 0
      %p421 = por %p419, %p420
      %p422 = scmp.ne.s32.totalorder %s410, %s411
      %p423 = scmp.eq.s32.totalorder %s39, 1
      %p424 = por %p422, %p423
      %p426 = scmp.ne.s32.totalorder %s411, %s425
      %p427 = scmp.eq.s32.totalorder %s39, 0
      %p428 = por %p426, %p427
      %s429 = ssub.s32 %s33, %s40
      %p430 = scmp.eq.s32.totalorder %s429, 0
      %s432 = sadd.s32 %s431, 1
      %s433 = scalar_select %p430, %s431, %s432
      %p436 = pneg %p430
      %p437 = scmp.eq.s32.totalorder %s33, 1
      %p438 = por %p436, %p437
      %p439 = scmp.ne.s32.totalorder %s431, %s434
      %p440 = scmp.eq.s32.totalorder %s33, 0
      %p441 = por %p439, %p440
      %p442 = scmp.ne.s32.totalorder %s431, %s434
      %p443 = scmp.eq.s32.totalorder %s38, 1
      %p444 = por %p442, %p443
      %p445 = scmp.ne.s32.totalorder %s434, %s435
      %p446 = scmp.eq.s32.totalorder %s38, 0
      %p447 = por %p445, %p446
      %p448 = scmp.ne.s32.totalorder %s434, %s435
      %p449 = scmp.eq.s32.totalorder %s39, 1
      %p450 = por %p448, %p449
      %p452 = scmp.ne.s32.totalorder %s435, %s451
      %p453 = scmp.eq.s32.totalorder %s39, 0
      %p454 = por %p452, %p453
      %p455 = scmp.le.s32.totalorder 1, %s33
      %p456 = scmp.lt.s32.totalorder %s33, 3
      %p457 = pnand %p455, %p456
      %p458 = pneg %p457
      // Predicated region
      $region9: #{tpu_custom_call.1} parent=5 // pred_check
        _
      $region10: #{tpu_custom_call.1} parent=5 // pred_check_branch
        %460 = sbr.rel (%p457) target = $region12
      $region11: #{tpu_custom_call.1} parent=5 // pred_region
        %s461 = ssub.s32 %s33, 1
        // Predicated region
        $region13: #{tpu_custom_call.1} parent=11 // pred_check
          %p462 = pneg %p106
        $region14: #{tpu_custom_call.1} parent=11 // pred_check_branch
          %464 = sbr.rel (%p462) target = $region16
        $region15: #{tpu_custom_call.1} parent=11 // pred_region
          %s466 = ssub.s32 512, 512
          %467 = vsyncadd [#allocation6], %s466
          %s468 = sshll.u32 [#allocation5], 4
          %s469 = int_to_ptr.vmem [resolvable:$true] %s468
          %474 = dma.hbm_to_vmem [thread:$0]  %s2, 512, %s469, [#allocation6], 128, 128, 8
        $region16: #{tpu_custom_call.1} parent=11 // pred_fallthru
          _
        // Predicated region
        $region17: #{tpu_custom_call.1} parent=11 // pred_check
          %p475 = pneg %p127
        $region18: #{tpu_custom_call.1} parent=11 // pred_check_branch
          %477 = sbr.rel (%p475) target = $region20
        $region19: #{tpu_custom_call.1} parent=11 // pred_region
          _
        $region20: #{tpu_custom_call.1} parent=11 // pred_fallthru
          _
        // Predicated region
        $region21: #{tpu_custom_call.1} parent=11 // pred_check
          %p478 = pneg %p148
        $region22: #{tpu_custom_call.1} parent=11 // pred_check_branch
          %480 = sbr.rel (%p478) target = $region24
        $region23: #{tpu_custom_call.1} parent=11 // pred_region
          %s482 = ssub.s32 512, 512
          %483 = vsyncadd [#allocation6], %s482
          %s484 = sshll.u32 [#allocation7], 4
          %s485 = int_to_ptr.vmem [resolvable:$true] %s484
          %490 = dma.hbm_to_vmem [thread:$0]  %s4, 512, %s485, [#allocation6], 128, 128, 8
        $region24: #{tpu_custom_call.1} parent=11 // pred_fallthru
          _
        // Predicated region
        $region25: #{tpu_custom_call.1} parent=11 // pred_check
          %p491 = pneg %p169
        $region26: #{tpu_custom_call.1} parent=11 // pred_check_branch
          %493 = sbr.rel (%p491) target = $region28
        $region27: #{tpu_custom_call.1} parent=11 // pred_region
          _
        $region28: #{tpu_custom_call.1} parent=11 // pred_fallthru
          _
        // Predicated region
        $region29: #{tpu_custom_call.1} parent=11 // pred_check
          %p494 = pneg %p190
        $region30: #{tpu_custom_call.1} parent=11 // pred_check_branch
          %496 = sbr.rel (%p494) target = $region32
        $region31: #{tpu_custom_call.1} parent=11 // pred_region
          %s498 = ssub.s32 512, 512
          %499 = vsyncadd [#allocation9], %s498
          %s500 = sshll.u32 [#allocation8], 4
          %s501 = int_to_ptr.vmem [resolvable:$true] %s500
          %506 = dma.hbm_to_vmem [thread:$0]  %s6, 512, %s501, [#allocation9], 128, 128, 8
        $region32: #{tpu_custom_call.1} parent=11 // pred_fallthru
          _
        // Predicated region
        $region33: #{tpu_custom_call.1} parent=11 // pred_check
          %p507 = pneg %p211
        $region34: #{tpu_custom_call.1} parent=11 // pred_check_branch
          %509 = sbr.rel (%p507) target = $region36
        $region35: #{tpu_custom_call.1} parent=11 // pred_region
          _
        $region36: #{tpu_custom_call.1} parent=11 // pred_fallthru
          _
        // Predicated region
        $region37: #{tpu_custom_call.1} parent=11 // pred_check
          %p510 = pneg %p232
        $region38: #{tpu_custom_call.1} parent=11 // pred_check_branch
          %512 = sbr.rel (%p510) target = $region40
        $region39: #{tpu_custom_call.1} parent=11 // pred_region
          %s514 = ssub.s32 512, 512
          %515 = vsyncadd [#allocation9], %s514
          %s516 = sshll.u32 [#allocation10], 4
          %s517 = int_to_ptr.vmem [resolvable:$true] %s516
          %522 = dma.hbm_to_vmem [thread:$0]  %s8, 512, %s517, [#allocation9], 128, 128, 8
        $region40: #{tpu_custom_call.1} parent=11 // pred_fallthru
          _
        // Predicated region
        $region41: #{tpu_custom_call.1} parent=11 // pred_check
          %p523 = pneg %p253
        $region42: #{tpu_custom_call.1} parent=11 // pred_check_branch
          %525 = sbr.rel (%p523) target = $region44
        $region43: #{tpu_custom_call.1} parent=11 // pred_region
          _
        $region44: #{tpu_custom_call.1} parent=11 // pred_fallthru
          _
        // Predicated region
        $region45: #{tpu_custom_call.1} parent=11 // pred_check
          %p526 = pneg %p274
        $region46: #{tpu_custom_call.1} parent=11 // pred_check_branch
          %528 = sbr.rel (%p526) target = $region48
        $region47: #{tpu_custom_call.1} parent=11 // pred_region
          _
        $region48: #{tpu_custom_call.1} parent=11 // pred_fallthru
          _
        // Predicated region
        $region49: #{tpu_custom_call.1} parent=11 // pred_check
          %p529 = pneg %p295
        $region50: #{tpu_custom_call.1} parent=11 // pred_check_branch
          %531 = sbr.rel (%p529) target = $region52
        $region51: #{tpu_custom_call.1} parent=11 // pred_region
          _
        $region52: #{tpu_custom_call.1} parent=11 // pred_fallthru
          _
        // Predicated region
        $region53: #{tpu_custom_call.1} parent=11 // pred_check
          %p532 = pneg %p316
        $region54: #{tpu_custom_call.1} parent=11 // pred_check_branch
          %534 = sbr.rel (%p532) target = $region56
        $region55: #{tpu_custom_call.1} parent=11 // pred_region
          _
        $region56: #{tpu_custom_call.1} parent=11 // pred_fallthru
          _
        // Predicated region
        $region57: #{tpu_custom_call.1} parent=11 // pred_check
          %p535 = pneg %p337
        $region58: #{tpu_custom_call.1} parent=11 // pred_check_branch
          %537 = sbr.rel (%p535) target = $region60
        $region59: #{tpu_custom_call.1} parent=11 // pred_region
          _
        $region60: #{tpu_custom_call.1} parent=11 // pred_fallthru
          _
        // Predicated region
        $region61: #{tpu_custom_call.1} parent=11 // pred_check
          %p538 = pneg %p358
        $region62: #{tpu_custom_call.1} parent=11 // pred_check_branch
          %540 = sbr.rel (%p538) target = $region64
        $region63: #{tpu_custom_call.1} parent=11 // pred_region
          %s542 = ssub.s32 512, 512
          %543 = vsyncadd [#allocation12], %s542
          %s544 = sshll.u32 [#allocation11], 4
          %s545 = int_to_ptr.vmem [resolvable:$true] %s544
          %550 = dma.hbm_to_vmem [thread:$0]  %s14, 512, %s545, [#allocation12], 128, 128, 8
        $region64: #{tpu_custom_call.1} parent=11 // pred_fallthru
          _
        // Predicated region
        $region65: #{tpu_custom_call.1} parent=11 // pred_check
          %p551 = pneg %p379
        $region66: #{tpu_custom_call.1} parent=11 // pred_check_branch
          %553 = sbr.rel (%p551) target = $region68
        $region67: #{tpu_custom_call.1} parent=11 // pred_region
          _
        $region68: #{tpu_custom_call.1} parent=11 // pred_fallthru
          _
        // Predicated region
        $region69: #{tpu_custom_call.1} parent=11 // pred_check
          %p554 = pneg %p400
        $region70: #{tpu_custom_call.1} parent=11 // pred_check_branch
          %556 = sbr.rel (%p554) target = $region72
        $region71: #{tpu_custom_call.1} parent=11 // pred_region
          _
        $region72: #{tpu_custom_call.1} parent=11 // pred_fallthru
          _
        // Predicated region
        $region73: #{tpu_custom_call.1} parent=11 // pred_check
          %p557 = pneg %p421
        $region74: #{tpu_custom_call.1} parent=11 // pred_check_branch
          %559 = sbr.rel (%p557) target = $region76
        $region75: #{tpu_custom_call.1} parent=11 // pred_region
          _
        $region76: #{tpu_custom_call.1} parent=11 // pred_fallthru
          _
      $region12: #{tpu_custom_call.1} parent=5 // pred_fallthru
        _
      %p560 = scmp.lt.s32.totalorder %s33, 2
      // Predicated region
      $region77: #{tpu_custom_call.1} parent=5 // pred_check
        %p561 = pneg %p560
      $region78: #{tpu_custom_call.1} parent=5 // pred_check_branch
        %563 = sbr.rel (%p561) target = $region80
      $region79: #{tpu_custom_call.1} parent=5 // pred_region
        // Predicated region
        $region81: #{tpu_custom_call.1} parent=79 // pred_check
          %p564 = pneg %p53
        $region82: #{tpu_custom_call.1} parent=79 // pred_check_branch
          %566 = sbr.rel (%p564) target = $region84
        $region83: #{tpu_custom_call.1} parent=79 // pred_region
          %s567 = sand.u32 %s43, 1
          %s568 = scalar_lea.sflag [#allocation3], %s567
          %s569 = sand.u32 %s43, 1
          %s570 = smul.addr %s569, 8
          %s571 = scalar_lea.vmem [#allocation2], %s570
          %s573 = ssub.s32 128, 128
          %574 = vsyncadd %s568, %s573
          %s575 = smul.addr %s33, 128
          %s576 = scalar_lea.hbm %s0, %s575
          %s578 = sshll.u32 %s571, 4
          %s579 = int_to_ptr.vmem [resolvable:$true] %s578
          %581 = dma.hbm_to_vmem [thread:$0]  %s576, 128, %s579, %s568
        $region84: #{tpu_custom_call.1} parent=79 // pred_fallthru
          _
        // Predicated region
        $region85: #{tpu_custom_call.1} parent=79 // pred_check
          %p582 = pneg %p79
        $region86: #{tpu_custom_call.1} parent=79 // pred_check_branch
          %584 = sbr.rel (%p582) target = $region88
        $region87: #{tpu_custom_call.1} parent=79 // pred_region
          %p585 = scmp.lt.s32.totalorder %s33, 1
          %s586 = scalar_select %p585, %s33, 1
          %s587 = scalar_lea.vmem %s1, %s586
        $region88: #{tpu_custom_call.1} parent=79 // pred_fallthru
          _
      $region80: #{tpu_custom_call.1} parent=5 // pred_fallthru
        _
      %p588 = scmp.le.s32.totalorder 1, %s33
      %p589 = scmp.lt.s32.totalorder %s33, 3
      %p590 = pnand %p588, %p589
      %p591 = pneg %p590
      // Predicated region
      $region89: #{tpu_custom_call.1} parent=5 // pred_check
        _
      $region90: #{tpu_custom_call.1} parent=5 // pred_check_branch
        %593 = sbr.rel (%p590) target = $region92
      $region91: #{tpu_custom_call.1} parent=5 // pred_region
        %s594 = ssub.s32 %s33, 1
        %s595 = sand.u32 %s46, 1
        %s596 = scalar_lea.sflag [#allocation3], %s595
        %s597 = sand.u32 %s46, 1
        %s598 = smul.addr %s597, 8
        %s599 = scalar_lea.vmem [#allocation2], %s598
        // Predicated region
        $region93: #{tpu_custom_call.1} parent=91 // pred_check
          %p600 = pneg %p59
        $region94: #{tpu_custom_call.1} parent=91 // pred_check_branch
          %602 = sbr.rel (%p600) target = $region96
        $region95: #{tpu_custom_call.1} parent=91 // pred_region
          %603 = dma.done %s596, 128
        $region96: #{tpu_custom_call.1} parent=91 // pred_fallthru
          _
        // Predicated region
        $region97: #{tpu_custom_call.1} parent=91 // pred_check
          %p604 = pneg %p106
        $region98: #{tpu_custom_call.1} parent=91 // pred_check_branch
          %606 = sbr.rel (%p604) target = $region100
        $region99: #{tpu_custom_call.1} parent=91 // pred_region
          %607 = dma.done [#allocation6], 512
        $region100: #{tpu_custom_call.1} parent=91 // pred_fallthru
          _
        // Predicated region
        $region101: #{tpu_custom_call.1} parent=91 // pred_check
          %p608 = pneg %p148
        $region102: #{tpu_custom_call.1} parent=91 // pred_check_branch
          %610 = sbr.rel (%p608) target = $region104
        $region103: #{tpu_custom_call.1} parent=91 // pred_region
          %611 = dma.done [#allocation6], 512
        $region104: #{tpu_custom_call.1} parent=91 // pred_fallthru
          _
        // Predicated region
        $region105: #{tpu_custom_call.1} parent=91 // pred_check
          %p612 = pneg %p190
        $region106: #{tpu_custom_call.1} parent=91 // pred_check_branch
          %614 = sbr.rel (%p612) target = $region108
        $region107: #{tpu_custom_call.1} parent=91 // pred_region
          %615 = dma.done [#allocation9], 512
        $region108: #{tpu_custom_call.1} parent=91 // pred_fallthru
          _
        // Predicated region
        $region109: #{tpu_custom_call.1} parent=91 // pred_check
          %p616 = pneg %p232
        $region110: #{tpu_custom_call.1} parent=91 // pred_check_branch
          %618 = sbr.rel (%p616) target = $region112
        $region111: #{tpu_custom_call.1} parent=91 // pred_region
          %619 = dma.done [#allocation9], 512
        $region112: #{tpu_custom_call.1} parent=91 // pred_fallthru
          _
        // Predicated region
        $region113: #{tpu_custom_call.1} parent=91 // pred_check
          %p620 = pneg %p358
        $region114: #{tpu_custom_call.1} parent=91 // pred_check_branch
          %622 = sbr.rel (%p620) target = $region116
        $region115: #{tpu_custom_call.1} parent=91 // pred_region
          %623 = dma.done [#allocation12], 512
        $region116: #{tpu_custom_call.1} parent=91 // pred_fallthru
          _
        %s624 = sand.u32 %s46, 1
        %s625 = scalar_lea.sflag [#allocation3], %s624
        %s626 = sand.u32 %s46, 1
        %s627 = smul.addr %s626, 8
        %s628 = scalar_lea.vmem [#allocation2], %s627
        %p629 = pneg %p59
        %p630 = pneg %p56
        %p631 = scmp.lt.s32.totalorder %s38, 1
        %s632 = scalar_select %p631, %s38, 1
        %s633 = scalar_lea.vmem %s1, %s632
        %p634 = pneg %p85
        %p635 = pneg %p82
        %p636 = pneg %p106
        %p637 = pneg %p103
        %p638 = pneg %p127
        %p639 = pneg %p124
        %p640 = pneg %p148
        %p641 = pneg %p145
        %p642 = pneg %p169
        %p643 = pneg %p166
        %p644 = pneg %p190
        %p645 = pneg %p187
        %p646 = pneg %p211
        %p647 = pneg %p208
        %p648 = pneg %p232
        %p649 = pneg %p229
        %p650 = pneg %p253
        %p651 = pneg %p250
        %p652 = pneg %p274
        %p653 = pneg %p271
        %p654 = pneg %p295
        %p655 = pneg %p292
        %p656 = pneg %p316
        %p657 = pneg %p313
        %p658 = pneg %p337
        %p659 = pneg %p334
        %p660 = pneg %p358
        %p661 = pneg %p355
        %p662 = pneg %p379
        %p663 = pneg %p376
        %p664 = pneg %p400
        %p665 = pneg %p397
        %p666 = pneg %p421
        %p667 = pneg %p418
        %p668 = pneg %p447
        %p669 = pneg %p444
        %s670 = sand.u32 %s434, 1
        %s671 = scalar_lea.sflag [#allocation4], %s670
        %s672 = sand.u32 %s434, 1
        %s673 = smul.addr %s672, 8
        %s674 = scalar_lea.vmem [#allocation13], %s673
        %p675 = scmp.lt.s32.totalorder %s38, 1
        %s676 = scalar_select %p675, %s38, 1
        %s677 = scalar_lea.vmem %s1, %s676
        %v678 = vld [vmem:[%s599] sm:$0xff]
        %v679 = vld [vmem:[%s677] sm:$0x1]
        %v680 = vld [vmem:[#allocation5] sm:$0xff]
        %v681 = vld [vmem:[#allocation5 + $0x8] sm:$0xff]
        %v682 = vld [vmem:[#allocation5 + $0x10] sm:$0xff]
        %v683 = vld [vmem:[#allocation5 + $0x18] sm:$0xff]
        %v684 = vld [vmem:[%s3] sm:$0x1]
        %v686 = vlaneseq
        %v687 = vshrl.u32 %v686, 7
        %v688 = vsub.s32 0, %v687
        %v689 = vrot.slane %v684, %v688
        %vm691 = vcmask 261120
        %v693 = vsel %vm691, %v678, 0
        %695 = vmatprep.subr.mxu0 0.0
        %696 = vmatpush1.msra.mxu0 %v680
        %697 = vmatprep.subr.mxu0 0.0
        %698 = vmatpush1.msra.mxu0 %v681
        %699 = vmatprep.subr.mxu0 0.0
        %700 = vmatpush1.msra.mxu0 %v682
        %701 = vmatprep.subr.mxu0 0.0
        %702 = vmatpush1.msra.mxu0 %v683
        %703 = vmatprep.subr.mxu0 0.0
        %704 = vmatpush1.msra.mxu0 0.0
        %705 = vmatprep.subr.mxu0 0.0
        %706 = vmatpush1.msra.mxu0 0.0
        %707 = vmatprep.subr.mxu0 0.0
        %708 = vmatpush1.msra.mxu0 0.0
        %709 = vmatprep.subr.mxu0 0.0
        %710 = vmatpush1.msra.mxu0 0.0
        %711 = vmatprep.subr.mxu0 0.0
        %712 = vmatpush1.msra.mxu0 0.0
        %713 = vmatprep.subr.mxu0 0.0
        %714 = vmatpush1.msra.mxu0 0.0
        %715 = vmatprep.subr.mxu0 0.0
        %716 = vmatpush1.msra.mxu0 0.0
        %717 = vmatprep.subr.mxu0 0.0
        %718 = vmatpush1.msra.mxu0 0.0
        %719 = vmatprep.subr.mxu0 0.0
        %720 = vmatpush1.msra.mxu0 0.0
        %721 = vmatprep.subr.mxu0 0.0
        %722 = vmatpush1.msra.mxu0 0.0
        %723 = vmatprep.subr.mxu0 0.0
        %724 = vmatpush1.msra.mxu0 0.0
        %725 = vmatprep.subr.mxu0 0.0
        %726 = vmatpush1.msra.mxu0 0.0
        %727 = vmatprep.subr.mxu0 0.0
        %728 = vmatpush1.msra.mxu0 0.0
        %729 = vmatprep.subr.mxu0 0.0
        %730 = vmatpush1.msra.mxu0 0.0
        %731 = vmatprep.subr.mxu0 0.0
        %732 = vmatpush1.msra.mxu0 0.0
        %733 = vmatprep.subr.mxu0 0.0
        %734 = vmatpush1.msra.mxu0 0.0
        %735 = vmatprep.subr.mxu0 0.0
        %736 = vmatpush1.msra.mxu0 0.0
        %737 = vmatprep.subr.mxu0 0.0
        %738 = vmatpush1.msra.mxu0 0.0
        %739 = vmatprep.subr.mxu0 0.0
        %740 = vmatpush1.msra.mxu0 0.0
        %741 = vmatprep.subr.mxu0 0.0
        %742 = vmatpush1.msra.mxu0 0.0
        %743 = vmatprep.subr.mxu0 0.0
        %744 = vmatpush1.msra.mxu0 0.0
        %745 = vmatprep.subr.mxu0 0.0
        %746 = vmatpush1.msra.mxu0 0.0
        %747 = vmatprep.subr.mxu0 0.0
        %748 = vmatpush1.msra.mxu0 0.0
        %749 = vmatprep.subr.mxu0 0.0
        %750 = vmatpush1.msra.mxu0 0.0
        %751 = vmatprep.subr.mxu0 0.0
        %752 = vmatpush1.msra.mxu0 0.0
        %753 = vmatprep.subr.mxu0 0.0
        %754 = vmatpush1.msra.mxu0 0.0
        %755 = vmatprep.subr.mxu0 0.0
        %756 = vmatpush1.msra.mxu0 0.0
        %757 = vmatprep.subr.mxu0 0.0
        %758 = vmatpush1.msra.mxu0 0.0
        %759 = vmatprep.mubr.f32.mxu0 0.0
        %760 = vmatmul.mubr.f32.gmra.mrb[0].mxu0 %v693
        %v761 = vpop.f32.mrb[0].mxu0
        %v762 = vadd.f32 %v689, %v761
        %v763 = vpop.f32.mrb[0].mxu0
        %764 = vdwg.mxu0
        %v765 = vmul.f32 %v762, 0.35355338
        %v766 = vld [vmem:[#allocation7] sm:$0xff]
        %v767 = vld [vmem:[#allocation7 + $0x8] sm:$0xff]
        %v768 = vld [vmem:[#allocation7 + $0x10] sm:$0xff]
        %v769 = vld [vmem:[#allocation7 + $0x18] sm:$0xff]
        %v770 = vld [vmem:[%s5] sm:$0x1]
        %v772 = vlaneseq
        %v773 = vshrl.u32 %v772, 7
        %v774 = vsub.s32 0, %v773
        %v775 = vrot.slane %v770, %v774
        %777 = vmatprep.subr.mxu0 0.0
        %778 = vmatpush1.msra.mxu0 %v766
        %779 = vmatprep.subr.mxu0 0.0
        %780 = vmatpush1.msra.mxu0 %v767
        %781 = vmatprep.subr.mxu0 0.0
        %782 = vmatpush1.msra.mxu0 %v768
        %783 = vmatprep.subr.mxu0 0.0
        %784 = vmatpush1.msra.mxu0 %v769
        %785 = vmatprep.subr.mxu0 0.0
        %786 = vmatpush1.msra.mxu0 0.0
        %787 = vmatprep.subr.mxu0 0.0
        %788 = vmatpush1.msra.mxu0 0.0
        %789 = vmatprep.subr.mxu0 0.0
        %790 = vmatpush1.msra.mxu0 0.0
        %791 = vmatprep.subr.mxu0 0.0
        %792 = vmatpush1.msra.mxu0 0.0
        %793 = vmatprep.subr.mxu0 0.0
        %794 = vmatpush1.msra.mxu0 0.0
        %795 = vmatprep.subr.mxu0 0.0
        %796 = vmatpush1.msra.mxu0 0.0
        %797 = vmatprep.subr.mxu0 0.0
        %798 = vmatpush1.msra.mxu0 0.0
        %799 = vmatprep.subr.mxu0 0.0
        %800 = vmatpush1.msra.mxu0 0.0
        %801 = vmatprep.subr.mxu0 0.0
        %802 = vmatpush1.msra.mxu0 0.0
        %803 = vmatprep.subr.mxu0 0.0
        %804 = vmatpush1.msra.mxu0 0.0
        %805 = vmatprep.subr.mxu0 0.0
        %806 = vmatpush1.msra.mxu0 0.0
        %807 = vmatprep.subr.mxu0 0.0
        %808 = vmatpush1.msra.mxu0 0.0
        %809 = vmatprep.subr.mxu0 0.0
        %810 = vmatpush1.msra.mxu0 0.0
        %811 = vmatprep.subr.mxu0 0.0
        %812 = vmatpush1.msra.mxu0 0.0
        %813 = vmatprep.subr.mxu0 0.0
        %814 = vmatpush1.msra.mxu0 0.0
        %815 = vmatprep.subr.mxu0 0.0
        %816 = vmatpush1.msra.mxu0 0.0
        %817 = vmatprep.subr.mxu0 0.0
        %818 = vmatpush1.msra.mxu0 0.0
        %819 = vmatprep.subr.mxu0 0.0
        %820 = vmatpush1.msra.mxu0 0.0
        %821 = vmatprep.subr.mxu0 0.0
        %822 = vmatpush1.msra.mxu0 0.0
        %823 = vmatprep.subr.mxu0 0.0
        %824 = vmatpush1.msra.mxu0 0.0
        %825 = vmatprep.subr.mxu0 0.0
        %826 = vmatpush1.msra.mxu0 0.0
        %827 = vmatprep.subr.mxu0 0.0
        %828 = vmatpush1.msra.mxu0 0.0
        %829 = vmatprep.subr.mxu0 0.0
        %830 = vmatpush1.msra.mxu0 0.0
        %831 = vmatprep.subr.mxu0 0.0
        %832 = vmatpush1.msra.mxu0 0.0
        %833 = vmatprep.subr.mxu0 0.0
        %834 = vmatpush1.msra.mxu0 0.0
        %835 = vmatprep.subr.mxu0 0.0
        %836 = vmatpush1.msra.mxu0 0.0
        %837 = vmatprep.subr.mxu0 0.0
        %838 = vmatpush1.msra.mxu0 0.0
        %839 = vmatprep.subr.mxu0 0.0
        %840 = vmatpush1.msra.mxu0 0.0
        %841 = vmatprep.mubr.f32.mxu0 0.0
        %842 = vmatmul.mubr.f32.gmra.mrb[0].mxu0 %v693
        %v843 = vpop.f32.mrb[0].mxu0
        %v844 = vadd.f32 %v775, %v843
        %v845 = vpop.f32.mrb[0].mxu0
        %846 = vdwg.mxu0
        %v847 = vld [vmem:[#allocation8] sm:$0xff]
        %v848 = vld [vmem:[#allocation8 + $0x8] sm:$0xff]
        %v849 = vld [vmem:[#allocation8 + $0x10] sm:$0xff]
        %v850 = vld [vmem:[#allocation8 + $0x18] sm:$0xff]
        %v851 = vld [vmem:[%s7] sm:$0x1]
        %v853 = vlaneseq
        %v854 = vshrl.u32 %v853, 7
        %v855 = vsub.s32 0, %v854
        %v856 = vrot.slane %v851, %v855
        %858 = vmatprep.subr.mxu0 0.0
        %859 = vmatpush1.msra.mxu0 %v847
        %860 = vmatprep.subr.mxu0 0.0
        %861 = vmatpush1.msra.mxu0 %v848
        %862 = vmatprep.subr.mxu0 0.0
        %863 = vmatpush1.msra.mxu0 %v849
        %864 = vmatprep.subr.mxu0 0.0
        %865 = vmatpush1.msra.mxu0 %v850
        %866 = vmatprep.subr.mxu0 0.0
        %867 = vmatpush1.msra.mxu0 0.0
        %868 = vmatprep.subr.mxu0 0.0
        %869 = vmatpush1.msra.mxu0 0.0
        %870 = vmatprep.subr.mxu0 0.0
        %871 = vmatpush1.msra.mxu0 0.0
        %872 = vmatprep.subr.mxu0 0.0
        %873 = vmatpush1.msra.mxu0 0.0
        %874 = vmatprep.subr.mxu0 0.0
        %875 = vmatpush1.msra.mxu0 0.0
        %876 = vmatprep.subr.mxu0 0.0
        %877 = vmatpush1.msra.mxu0 0.0
        %878 = vmatprep.subr.mxu0 0.0
        %879 = vmatpush1.msra.mxu0 0.0
        %880 = vmatprep.subr.mxu0 0.0
        %881 = vmatpush1.msra.mxu0 0.0
        %882 = vmatprep.subr.mxu0 0.0
        %883 = vmatpush1.msra.mxu0 0.0
        %884 = vmatprep.subr.mxu0 0.0
        %885 = vmatpush1.msra.mxu0 0.0
        %886 = vmatprep.subr.mxu0 0.0
        %887 = vmatpush1.msra.mxu0 0.0
        %888 = vmatprep.subr.mxu0 0.0
        %889 = vmatpush1.msra.mxu0 0.0
        %890 = vmatprep.subr.mxu0 0.0
        %891 = vmatpush1.msra.mxu0 0.0
        %892 = vmatprep.subr.mxu0 0.0
        %893 = vmatpush1.msra.mxu0 0.0
        %894 = vmatprep.subr.mxu0 0.0
        %895 = vmatpush1.msra.mxu0 0.0
        %896 = vmatprep.subr.mxu0 0.0
        %897 = vmatpush1.msra.mxu0 0.0
        %898 = vmatprep.subr.mxu0 0.0
        %899 = vmatpush1.msra.mxu0 0.0
        %900 = vmatprep.subr.mxu0 0.0
        %901 = vmatpush1.msra.mxu0 0.0
        %902 = vmatprep.subr.mxu0 0.0
        %903 = vmatpush1.msra.mxu0 0.0
        %904 = vmatprep.subr.mxu0 0.0
        %905 = vmatpush1.msra.mxu0 0.0
        %906 = vmatprep.subr.mxu0 0.0
        %907 = vmatpush1.msra.mxu0 0.0
        %908 = vmatprep.subr.mxu0 0.0
        %909 = vmatpush1.msra.mxu0 0.0
        %910 = vmatprep.subr.mxu0 0.0
        %911 = vmatpush1.msra.mxu0 0.0
        %912 = vmatprep.subr.mxu0 0.0
        %913 = vmatpush1.msra.mxu0 0.0
        %914 = vmatprep.subr.mxu0 0.0
        %915 = vmatpush1.msra.mxu0 0.0
        %916 = vmatprep.subr.mxu0 0.0
        %917 = vmatpush1.msra.mxu0 0.0
        %918 = vmatprep.subr.mxu0 0.0
        %919 = vmatpush1.msra.mxu0 0.0
        %920 = vmatprep.subr.mxu0 0.0
        %921 = vmatpush1.msra.mxu0 0.0
        %922 = vmatprep.mubr.f32.mxu0 0.0
        %923 = vmatmul.mubr.f32.gmra.mrb[0].mxu0 %v693
        %v924 = vpop.f32.mrb[0].mxu0
        %v925 = vadd.f32 %v856, %v924
        %v926 = vpop.f32.mrb[0].mxu0
        %927 = vdwg.mxu0
        %929 = vrot.lane.b32.xlu0 %v765, 120
        %v930 = vpop.permute.xlu0 %929
        %932 = vrot.lane.b32.xlu0 %v765, 112
        %v933 = vpop.permute.xlu0 %932
        %935 = vrot.lane.b32.xlu0 %v765, 104
        %v936 = vpop.permute.xlu0 %935
        %v938 = vcombine.low %v765, %v933
        %v939 = vcombine.high %v765, %v933
        %v941 = vunpack.c.l.s4 1983009808
        %v942 = vunpack.c.0.s8 %v941
        %v943 = vlaneseq
        %v944 = vshrl.u32 %v943, 7
        %v945 = vsub.s32 %v942, %v944
        %v946 = vrot.slane %v938, %v945
        %v948 = vunpack.c.l.s4 1983009808
        %v949 = vunpack.c.0.s8 %v948
        %v950 = vlaneseq
        %v951 = vshrl.u32 %v950, 7
        %v952 = vsub.s32 %v949, %v951
        %v953 = vrot.slane %v939, %v952
        %v954 = vcombine.low %v930, %v936
        %v955 = vcombine.high %v930, %v936
        %v957 = vunpack.c.l.s4 1983009808
        %v958 = vunpack.c.0.s8 %v957
        %v959 = vlaneseq
        %v960 = vshrl.u32 %v959, 7
        %v961 = vsub.s32 %v958, %v960
        %v962 = vrot.slane %v954, %v961
        %v964 = vunpack.c.l.s4 1983009808
        %v965 = vunpack.c.0.s8 %v964
        %v966 = vlaneseq
        %v967 = vshrl.u32 %v966, 7
        %v968 = vsub.s32 %v965, %v967
        %v969 = vrot.slane %v955, %v968
        %v970 = vcombine.low %v946, %v962
        %v971 = vcombine.high %v946, %v962
        %v973 = vunpack.c.l.s4 1934713408
        %v974 = vunpack.c.0.s8 %v973
        %v975 = vlaneseq
        %v976 = vshrl.u32 %v975, 7
        %v977 = vsub.s32 %v974, %v976
        %v978 = vrot.slane %v970, %v977
        %v980 = vunpack.c.l.s4 1934713408
        %v981 = vunpack.c.0.s8 %v980
        %v982 = vlaneseq
        %v983 = vshrl.u32 %v982, 7
        %v984 = vsub.s32 %v981, %v983
        %v985 = vrot.slane %v971, %v984
        %v986 = vcombine.low %v953, %v969
        %v987 = vcombine.high %v953, %v969
        %v989 = vunpack.c.l.s4 1934713408
        %v990 = vunpack.c.0.s8 %v989
        %v991 = vlaneseq
        %v992 = vshrl.u32 %v991, 7
        %v993 = vsub.s32 %v990, %v992
        %v994 = vrot.slane %v986, %v993
        %v996 = vunpack.c.l.s4 1934713408
        %v997 = vunpack.c.0.s8 %v996
        %v998 = vlaneseq
        %v999 = vshrl.u32 %v998, 7
        %v1000 = vsub.s32 %v997, %v999
        %v1001 = vrot.slane %v987, %v1000
        %v1002 = vcombine.high %v978, 0.0
        %v1003 = vcombine.high %v985, 0.0
        %v1004 = vcombine.high %v994, 0.0
        %v1005 = vcombine.high %v1001, 0.0
        %v1006 = vcombine.low %v978, %v985
        %v1008 = vunpack.c.l.s4 1983009808
        %v1009 = vunpack.c.0.s8 %v1008
        %v1010 = vlaneseq
        %v1011 = vshrl.u32 %v1010, 7
        %v1012 = vsub.s32 %v1009, %v1011
        %v1013 = vrot.slane %v1006, %v1012
        %v1014 = vcombine.low %v1002, %v1003
        %v1016 = vunpack.c.l.s4 1983009808
        %v1017 = vunpack.c.0.s8 %v1016
        %v1018 = vlaneseq
        %v1019 = vshrl.u32 %v1018, 7
        %v1020 = vsub.s32 %v1017, %v1019
        %v1021 = vrot.slane %v1014, %v1020
        %v1022 = vcombine.low %v994, %v1001
        %v1024 = vunpack.c.l.s4 1983009808
        %v1025 = vunpack.c.0.s8 %v1024
        %v1026 = vlaneseq
        %v1027 = vshrl.u32 %v1026, 7
        %v1028 = vsub.s32 %v1025, %v1027
        %v1029 = vrot.slane %v1022, %v1028
        %v1030 = vcombine.low %v1004, %v1005
        %v1032 = vunpack.c.l.s4 1983009808
        %v1033 = vunpack.c.0.s8 %v1032
        %v1034 = vlaneseq
        %v1035 = vshrl.u32 %v1034, 7
        %v1036 = vsub.s32 %v1033, %v1035
        %v1037 = vrot.slane %v1030, %v1036
        %v1038 = vcombine.low %v1013, %v1021
        %v1039 = vcombine.high %v1013, %v1021
        %v1041 = vunpack.c.l.s4 1934713408
        %v1042 = vunpack.c.0.s8 %v1041
        %v1043 = vlaneseq
        %v1044 = vshrl.u32 %v1043, 7
        %v1045 = vsub.s32 %v1042, %v1044
        %v1046 = vrot.slane %v1038, %v1045
        %v1048 = vunpack.c.l.s4 1934713408
        %v1049 = vunpack.c.0.s8 %v1048
        %v1050 = vlaneseq
        %v1051 = vshrl.u32 %v1050, 7
        %v1052 = vsub.s32 %v1049, %v1051
        %v1053 = vrot.slane %v1039, %v1052
        %v1054 = vcombine.low %v1029, %v1037
        %v1055 = vcombine.high %v1029, %v1037
        %v1057 = vunpack.c.l.s4 1934713408
        %v1058 = vunpack.c.0.s8 %v1057
        %v1059 = vlaneseq
        %v1060 = vshrl.u32 %v1059, 7
        %v1061 = vsub.s32 %v1058, %v1060
        %v1062 = vrot.slane %v1054, %v1061
        %v1064 = vunpack.c.l.s4 1934713408
        %v1065 = vunpack.c.0.s8 %v1064
        %v1066 = vlaneseq
        %v1067 = vshrl.u32 %v1066, 7
        %v1068 = vsub.s32 %v1065, %v1067
        %v1069 = vrot.slane %v1055, %v1068
        %v1070 = vcombine.low %v1046, %v1062
        %v1071 = vcombine.high %v1046, %v1062
        %v1072 = vcombine.low %v1053, %v1069
        %v1073 = vcombine.high %v1053, %v1069
        %1075 = vrot.lane.b32.xlu0 %v844, 120
        %v1076 = vpop.permute.xlu0 %1075
        %1078 = vrot.lane.b32.xlu0 %v844, 112
        %v1079 = vpop.permute.xlu0 %1078
        %1081 = vrot.lane.b32.xlu0 %v844, 104
        %v1082 = vpop.permute.xlu0 %1081
        %v1084 = vcombine.low %v844, %v1079
        %v1085 = vcombine.high %v844, %v1079
        %v1087 = vunpack.c.l.s4 1983009808
        %v1088 = vunpack.c.0.s8 %v1087
        %v1089 = vlaneseq
        %v1090 = vshrl.u32 %v1089, 7
        %v1091 = vsub.s32 %v1088, %v1090
        %v1092 = vrot.slane %v1084, %v1091
        %v1094 = vunpack.c.l.s4 1983009808
        %v1095 = vunpack.c.0.s8 %v1094
        %v1096 = vlaneseq
        %v1097 = vshrl.u32 %v1096, 7
        %v1098 = vsub.s32 %v1095, %v1097
        %v1099 = vrot.slane %v1085, %v1098
        %v1100 = vcombine.low %v1076, %v1082
        %v1101 = vcombine.high %v1076, %v1082
        %v1103 = vunpack.c.l.s4 1983009808
        %v1104 = vunpack.c.0.s8 %v1103
        %v1105 = vlaneseq
        %v1106 = vshrl.u32 %v1105, 7
        %v1107 = vsub.s32 %v1104, %v1106
        %v1108 = vrot.slane %v1100, %v1107
        %v1110 = vunpack.c.l.s4 1983009808
        %v1111 = vunpack.c.0.s8 %v1110
        %v1112 = vlaneseq
        %v1113 = vshrl.u32 %v1112, 7
        %v1114 = vsub.s32 %v1111, %v1113
        %v1115 = vrot.slane %v1101, %v1114
        %v1116 = vcombine.low %v1092, %v1108
        %v1117 = vcombine.high %v1092, %v1108
        %v1119 = vunpack.c.l.s4 1934713408
        %v1120 = vunpack.c.0.s8 %v1119
        %v1121 = vlaneseq
        %v1122 = vshrl.u32 %v1121, 7
        %v1123 = vsub.s32 %v1120, %v1122
        %v1124 = vrot.slane %v1116, %v1123
        %v1126 = vunpack.c.l.s4 1934713408
        %v1127 = vunpack.c.0.s8 %v1126
        %v1128 = vlaneseq
        %v1129 = vshrl.u32 %v1128, 7
        %v1130 = vsub.s32 %v1127, %v1129
        %v1131 = vrot.slane %v1117, %v1130
        %v1132 = vcombine.low %v1099, %v1115
        %v1133 = vcombine.high %v1099, %v1115
        %v1135 = vunpack.c.l.s4 1934713408
        %v1136 = vunpack.c.0.s8 %v1135
        %v1137 = vlaneseq
        %v1138 = vshrl.u32 %v1137, 7
        %v1139 = vsub.s32 %v1136, %v1138
        %v1140 = vrot.slane %v1132, %v1139
        %v1142 = vunpack.c.l.s4 1934713408
        %v1143 = vunpack.c.0.s8 %v1142
        %v1144 = vlaneseq
        %v1145 = vshrl.u32 %v1144, 7
        %v1146 = vsub.s32 %v1143, %v1145
        %v1147 = vrot.slane %v1133, %v1146
        %v1148 = vcombine.high %v1124, 0.0
        %v1149 = vcombine.high %v1131, 0.0
        %v1150 = vcombine.high %v1140, 0.0
        %v1151 = vcombine.high %v1147, 0.0
        %v1152 = vcombine.low %v1124, %v1131
        %v1154 = vunpack.c.l.s4 1983009808
        %v1155 = vunpack.c.0.s8 %v1154
        %v1156 = vlaneseq
        %v1157 = vshrl.u32 %v1156, 7
        %v1158 = vsub.s32 %v1155, %v1157
        %v1159 = vrot.slane %v1152, %v1158
        %v1160 = vcombine.low %v1148, %v1149
        %v1162 = vunpack.c.l.s4 1983009808
        %v1163 = vunpack.c.0.s8 %v1162
        %v1164 = vlaneseq
        %v1165 = vshrl.u32 %v1164, 7
        %v1166 = vsub.s32 %v1163, %v1165
        %v1167 = vrot.slane %v1160, %v1166
        %v1168 = vcombine.low %v1140, %v1147
        %v1170 = vunpack.c.l.s4 1983009808
        %v1171 = vunpack.c.0.s8 %v1170
        %v1172 = vlaneseq
        %v1173 = vshrl.u32 %v1172, 7
        %v1174 = vsub.s32 %v1171, %v1173
        %v1175 = vrot.slane %v1168, %v1174
        %v1176 = vcombine.low %v1150, %v1151
        %v1178 = vunpack.c.l.s4 1983009808
        %v1179 = vunpack.c.0.s8 %v1178
        %v1180 = vlaneseq
        %v1181 = vshrl.u32 %v1180, 7
        %v1182 = vsub.s32 %v1179, %v1181
        %v1183 = vrot.slane %v1176, %v1182
        %v1184 = vcombine.low %v1159, %v1167
        %v1185 = vcombine.high %v1159, %v1167
        %v1187 = vunpack.c.l.s4 1934713408
        %v1188 = vunpack.c.0.s8 %v1187
        %v1189 = vlaneseq
        %v1190 = vshrl.u32 %v1189, 7
        %v1191 = vsub.s32 %v1188, %v1190
        %v1192 = vrot.slane %v1184, %v1191
        %v1194 = vunpack.c.l.s4 1934713408
        %v1195 = vunpack.c.0.s8 %v1194
        %v1196 = vlaneseq
        %v1197 = vshrl.u32 %v1196, 7
        %v1198 = vsub.s32 %v1195, %v1197
        %v1199 = vrot.slane %v1185, %v1198
        %v1200 = vcombine.low %v1175, %v1183
        %v1201 = vcombine.high %v1175, %v1183
        %v1203 = vunpack.c.l.s4 1934713408
        %v1204 = vunpack.c.0.s8 %v1203
        %v1205 = vlaneseq
        %v1206 = vshrl.u32 %v1205, 7
        %v1207 = vsub.s32 %v1204, %v1206
        %v1208 = vrot.slane %v1200, %v1207
        %v1210 = vunpack.c.l.s4 1934713408
        %v1211 = vunpack.c.0.s8 %v1210
        %v1212 = vlaneseq
        %v1213 = vshrl.u32 %v1212, 7
        %v1214 = vsub.s32 %v1211, %v1213
        %v1215 = vrot.slane %v1201, %v1214
        %v1216 = vcombine.low %v1192, %v1208
        %v1217 = vcombine.high %v1192, %v1208
        %v1218 = vcombine.low %v1199, %v1215
        %v1219 = vcombine.high %v1199, %v1215
        %1221 = vrot.lane.b32.xlu0 %v925, 120
        %v1222 = vpop.permute.xlu0 %1221
        %1224 = vrot.lane.b32.xlu0 %v925, 112
        %v1225 = vpop.permute.xlu0 %1224
        %1227 = vrot.lane.b32.xlu0 %v925, 104
        %v1228 = vpop.permute.xlu0 %1227
        %v1230 = vcombine.low %v925, %v1225
        %v1231 = vcombine.high %v925, %v1225
        %v1233 = vunpack.c.l.s4 1983009808
        %v1234 = vunpack.c.0.s8 %v1233
        %v1235 = vlaneseq
        %v1236 = vshrl.u32 %v1235, 7
        %v1237 = vsub.s32 %v1234, %v1236
        %v1238 = vrot.slane %v1230, %v1237
        %v1240 = vunpack.c.l.s4 1983009808
        %v1241 = vunpack.c.0.s8 %v1240
        %v1242 = vlaneseq
        %v1243 = vshrl.u32 %v1242, 7
        %v1244 = vsub.s32 %v1241, %v1243
        %v1245 = vrot.slane %v1231, %v1244
        %v1246 = vcombine.low %v1222, %v1228
        %v1247 = vcombine.high %v1222, %v1228
        %v1249 = vunpack.c.l.s4 1983009808
        %v1250 = vunpack.c.0.s8 %v1249
        %v1251 = vlaneseq
        %v1252 = vshrl.u32 %v1251, 7
        %v1253 = vsub.s32 %v1250, %v1252
        %v1254 = vrot.slane %v1246, %v1253
        %v1256 = vunpack.c.l.s4 1983009808
        %v1257 = vunpack.c.0.s8 %v1256
        %v1258 = vlaneseq
        %v1259 = vshrl.u32 %v1258, 7
        %v1260 = vsub.s32 %v1257, %v1259
        %v1261 = vrot.slane %v1247, %v1260
        %v1262 = vcombine.low %v1238, %v1254
        %v1263 = vcombine.high %v1238, %v1254
        %v1265 = vunpack.c.l.s4 1934713408
        %v1266 = vunpack.c.0.s8 %v1265
        %v1267 = vlaneseq
        %v1268 = vshrl.u32 %v1267, 7
        %v1269 = vsub.s32 %v1266, %v1268
        %v1270 = vrot.slane %v1262, %v1269
        %v1272 = vunpack.c.l.s4 1934713408
        %v1273 = vunpack.c.0.s8 %v1272
        %v1274 = vlaneseq
        %v1275 = vshrl.u32 %v1274, 7
        %v1276 = vsub.s32 %v1273, %v1275
        %v1277 = vrot.slane %v1263, %v1276
        %v1278 = vcombine.low %v1245, %v1261
        %v1279 = vcombine.high %v1245, %v1261
        %v1281 = vunpack.c.l.s4 1934713408
        %v1282 = vunpack.c.0.s8 %v1281
        %v1283 = vlaneseq
        %v1284 = vshrl.u32 %v1283, 7
        %v1285 = vsub.s32 %v1282, %v1284
        %v1286 = vrot.slane %v1278, %v1285
        %v1288 = vunpack.c.l.s4 1934713408
        %v1289 = vunpack.c.0.s8 %v1288
        %v1290 = vlaneseq
        %v1291 = vshrl.u32 %v1290, 7
        %v1292 = vsub.s32 %v1289, %v1291
        %v1293 = vrot.slane %v1279, %v1292
        %v1294 = vcombine.high %v1270, 0.0
        %v1295 = vcombine.high %v1277, 0.0
        %v1296 = vcombine.high %v1286, 0.0
        %v1297 = vcombine.high %v1293, 0.0
        %v1298 = vcombine.low %v1270, %v1277
        %v1300 = vunpack.c.l.s4 1983009808
        %v1301 = vunpack.c.0.s8 %v1300
        %v1302 = vlaneseq
        %v1303 = vshrl.u32 %v1302, 7
        %v1304 = vsub.s32 %v1301, %v1303
        %v1305 = vrot.slane %v1298, %v1304
        %v1306 = vcombine.low %v1294, %v1295
        %v1308 = vunpack.c.l.s4 1983009808
        %v1309 = vunpack.c.0.s8 %v1308
        %v1310 = vlaneseq
        %v1311 = vshrl.u32 %v1310, 7
        %v1312 = vsub.s32 %v1309, %v1311
        %v1313 = vrot.slane %v1306, %v1312
        %v1314 = vcombine.low %v1286, %v1293
        %v1316 = vunpack.c.l.s4 1983009808
        %v1317 = vunpack.c.0.s8 %v1316
        %v1318 = vlaneseq
        %v1319 = vshrl.u32 %v1318, 7
        %v1320 = vsub.s32 %v1317, %v1319
        %v1321 = vrot.slane %v1314, %v1320
        %v1322 = vcombine.low %v1296, %v1297
        %v1324 = vunpack.c.l.s4 1983009808
        %v1325 = vunpack.c.0.s8 %v1324
        %v1326 = vlaneseq
        %v1327 = vshrl.u32 %v1326, 7
        %v1328 = vsub.s32 %v1325, %v1327
        %v1329 = vrot.slane %v1322, %v1328
        %v1330 = vcombine.low %v1305, %v1313
        %v1331 = vcombine.high %v1305, %v1313
        %v1333 = vunpack.c.l.s4 1934713408
        %v1334 = vunpack.c.0.s8 %v1333
        %v1335 = vlaneseq
        %v1336 = vshrl.u32 %v1335, 7
        %v1337 = vsub.s32 %v1334, %v1336
        %v1338 = vrot.slane %v1330, %v1337
        %v1340 = vunpack.c.l.s4 1934713408
        %v1341 = vunpack.c.0.s8 %v1340
        %v1342 = vlaneseq
        %v1343 = vshrl.u32 %v1342, 7
        %v1344 = vsub.s32 %v1341, %v1343
        %v1345 = vrot.slane %v1331, %v1344
        %v1346 = vcombine.low %v1321, %v1329
        %v1347 = vcombine.high %v1321, %v1329
        %v1349 = vunpack.c.l.s4 1934713408
        %v1350 = vunpack.c.0.s8 %v1349
        %v1351 = vlaneseq
        %v1352 = vshrl.u32 %v1351, 7
        %v1353 = vsub.s32 %v1350, %v1352
        %v1354 = vrot.slane %v1346, %v1353
        %v1356 = vunpack.c.l.s4 1934713408
        %v1357 = vunpack.c.0.s8 %v1356
        %v1358 = vlaneseq
        %v1359 = vshrl.u32 %v1358, 7
        %v1360 = vsub.s32 %v1357, %v1359
        %v1361 = vrot.slane %v1347, %v1360
        %v1362 = vcombine.low %v1338, %v1354
        %v1363 = vcombine.high %v1338, %v1354
        %v1364 = vcombine.low %v1345, %v1361
        %v1365 = vcombine.high %v1345, %v1361
        %v1366 = vmul.f32 %v679, -1e+15
        %v1368 = vlaneseq
        %v1369 = vshrl.u32 %v1368, 7
        %v1370 = vsub.s32 0, %v1369
        %v1371 = vrot.slane %v1366, %v1370
        %vm1373 = vcmask 64512
        %v1375 = vsel %vm1373, %v1070, 0
        %v1378 = vsel %vm1373, %v1216, 0
        %1380 = vmatprep.subr.mxu0 0.0
        %1381 = vmatpush1.xpose.msra.mxu0 %v1378
        %1382 = vmatprep.subr.mxu0 0.0
        %1383 = vmatpush1.xpose.msra.mxu0 0.0
        %1384 = vmatprep.subr.mxu0 0.0
        %1385 = vmatpush1.xpose.msra.mxu0 0.0
        %1386 = vmatprep.subr.mxu0 0.0
        %1387 = vmatpush1.xpose.msra.mxu0 0.0
        %1388 = vmatprep.subr.mxu0 0.0
        %1389 = vmatpush1.xpose.msra.mxu0 0.0
        %1390 = vmatprep.subr.mxu0 0.0
        %1391 = vmatpush1.xpose.msra.mxu0 0.0
        %1392 = vmatprep.subr.mxu0 0.0
        %1393 = vmatpush1.xpose.msra.mxu0 0.0
        %1394 = vmatprep.subr.mxu0 0.0
        %1395 = vmatpush1.xpose.msra.mxu0 0.0
        %1396 = vmatprep.subr.mxu0 0.0
        %1397 = vmatpush1.xpose.msra.mxu0 0.0
        %1398 = vmatprep.subr.mxu0 0.0
        %1399 = vmatpush1.xpose.msra.mxu0 0.0
        %1400 = vmatprep.subr.mxu0 0.0
        %1401 = vmatpush1.xpose.msra.mxu0 0.0
        %1402 = vmatprep.subr.mxu0 0.0
        %1403 = vmatpush1.xpose.msra.mxu0 0.0
        %1404 = vmatprep.subr.mxu0 0.0
        %1405 = vmatpush1.xpose.msra.mxu0 0.0
        %1406 = vmatprep.subr.mxu0 0.0
        %1407 = vmatpush1.xpose.msra.mxu0 0.0
        %1408 = vmatprep.subr.mxu0 0.0
        %1409 = vmatpush1.xpose.msra.mxu0 0.0
        %1410 = vmatprep.subr.mxu0 0.0
        %1411 = vmatpush1.xpose.msra.mxu0 0.0
        %1412 = vmatprep.subr.mxu0 0.0
        %1413 = vmatpush1.xpose.msra.mxu0 0.0
        %1414 = vmatprep.subr.mxu0 0.0
        %1415 = vmatpush1.xpose.msra.mxu0 0.0
        %1416 = vmatprep.subr.mxu0 0.0
        %1417 = vmatpush1.xpose.msra.mxu0 0.0
        %1418 = vmatprep.subr.mxu0 0.0
        %1419 = vmatpush1.xpose.msra.mxu0 0.0
        %1420 = vmatprep.subr.mxu0 0.0
        %1421 = vmatpush1.xpose.msra.mxu0 0.0
        %1422 = vmatprep.subr.mxu0 0.0
        %1423 = vmatpush1.xpose.msra.mxu0 0.0
        %1424 = vmatprep.subr.mxu0 0.0
        %1425 = vmatpush1.xpose.msra.mxu0 0.0
        %1426 = vmatprep.subr.mxu0 0.0
        %1427 = vmatpush1.xpose.msra.mxu0 0.0
        %1428 = vmatprep.subr.mxu0 0.0
        %1429 = vmatpush1.xpose.msra.mxu0 0.0
        %1430 = vmatprep.subr.mxu0 0.0
        %1431 = vmatpush1.xpose.msra.mxu0 0.0
        %1432 = vmatprep.subr.mxu0 0.0
        %1433 = vmatpush1.xpose.msra.mxu0 0.0
        %1434 = vmatprep.subr.mxu0 0.0
        %1435 = vmatpush1.xpose.msra.mxu0 0.0
        %1436 = vmatprep.subr.mxu0 0.0
        %1437 = vmatpush1.xpose.msra.mxu0 0.0
        %1438 = vmatprep.subr.mxu0 0.0
        %1439 = vmatpush1.xpose.msra.mxu0 0.0
        %1440 = vmatprep.subr.mxu0 0.0
        %1441 = vmatpush1.xpose.msra.mxu0 0.0
        %1442 = vmatprep.subr.mxu0 0.0
        %1443 = vmatpush1.xpose.msra.mxu0 0.0
        %1444 = vmatprep.mubr.f32.mxu0 0.0
        %1445 = vmatmul.mubr.f32.gmra.mrb[0].mxu0 %v1375
        %v1446 = vpop.f32.mrb[0].mxu0
        %v1447 = vadd.f32 %v1371, %v1446
        %v1448 = vpop.f32.mrb[0].mxu0
        %1449 = vdwg.mxu0
        %v1451 = vsel %vm1373, %v1071, 0
        %v1454 = vsel %vm1373, %v1217, 0
        %1456 = vmatprep.subr.mxu0 0.0
        %1457 = vmatpush1.xpose.msra.mxu0 %v1454
        %1458 = vmatprep.subr.mxu0 0.0
        %1459 = vmatpush1.xpose.msra.mxu0 0.0
        %1460 = vmatprep.subr.mxu0 0.0
        %1461 = vmatpush1.xpose.msra.mxu0 0.0
        %1462 = vmatprep.subr.mxu0 0.0
        %1463 = vmatpush1.xpose.msra.mxu0 0.0
        %1464 = vmatprep.subr.mxu0 0.0
        %1465 = vmatpush1.xpose.msra.mxu0 0.0
        %1466 = vmatprep.subr.mxu0 0.0
        %1467 = vmatpush1.xpose.msra.mxu0 0.0
        %1468 = vmatprep.subr.mxu0 0.0
        %1469 = vmatpush1.xpose.msra.mxu0 0.0
        %1470 = vmatprep.subr.mxu0 0.0
        %1471 = vmatpush1.xpose.msra.mxu0 0.0
        %1472 = vmatprep.subr.mxu0 0.0
        %1473 = vmatpush1.xpose.msra.mxu0 0.0
        %1474 = vmatprep.subr.mxu0 0.0
        %1475 = vmatpush1.xpose.msra.mxu0 0.0
        %1476 = vmatprep.subr.mxu0 0.0
        %1477 = vmatpush1.xpose.msra.mxu0 0.0
        %1478 = vmatprep.subr.mxu0 0.0
        %1479 = vmatpush1.xpose.msra.mxu0 0.0
        %1480 = vmatprep.subr.mxu0 0.0
        %1481 = vmatpush1.xpose.msra.mxu0 0.0
        %1482 = vmatprep.subr.mxu0 0.0
        %1483 = vmatpush1.xpose.msra.mxu0 0.0
        %1484 = vmatprep.subr.mxu0 0.0
        %1485 = vmatpush1.xpose.msra.mxu0 0.0
        %1486 = vmatprep.subr.mxu0 0.0
        %1487 = vmatpush1.xpose.msra.mxu0 0.0
        %1488 = vmatprep.subr.mxu0 0.0
        %1489 = vmatpush1.xpose.msra.mxu0 0.0
        %1490 = vmatprep.subr.mxu0 0.0
        %1491 = vmatpush1.xpose.msra.mxu0 0.0
        %1492 = vmatprep.subr.mxu0 0.0
        %1493 = vmatpush1.xpose.msra.mxu0 0.0
        %1494 = vmatprep.subr.mxu0 0.0
        %1495 = vmatpush1.xpose.msra.mxu0 0.0
        %1496 = vmatprep.subr.mxu0 0.0
        %1497 = vmatpush1.xpose.msra.mxu0 0.0
        %1498 = vmatprep.subr.mxu0 0.0
        %1499 = vmatpush1.xpose.msra.mxu0 0.0
        %1500 = vmatprep.subr.mxu0 0.0
        %1501 = vmatpush1.xpose.msra.mxu0 0.0
        %1502 = vmatprep.subr.mxu0 0.0
        %1503 = vmatpush1.xpose.msra.mxu0 0.0
        %1504 = vmatprep.subr.mxu0 0.0
        %1505 = vmatpush1.xpose.msra.mxu0 0.0
        %1506 = vmatprep.subr.mxu0 0.0
        %1507 = vmatpush1.xpose.msra.mxu0 0.0
        %1508 = vmatprep.subr.mxu0 0.0
        %1509 = vmatpush1.xpose.msra.mxu0 0.0
        %1510 = vmatprep.subr.mxu0 0.0
        %1511 = vmatpush1.xpose.msra.mxu0 0.0
        %1512 = vmatprep.subr.mxu0 0.0
        %1513 = vmatpush1.xpose.msra.mxu0 0.0
        %1514 = vmatprep.subr.mxu0 0.0
        %1515 = vmatpush1.xpose.msra.mxu0 0.0
        %1516 = vmatprep.subr.mxu0 0.0
        %1517 = vmatpush1.xpose.msra.mxu0 0.0
        %1518 = vmatprep.subr.mxu0 0.0
        %1519 = vmatpush1.xpose.msra.mxu0 0.0
        %1520 = vmatprep.mubr.f32.mxu0 0.0
        %1521 = vmatmul.mubr.f32.gmra.mrb[0].mxu0 %v1451
        %v1522 = vpop.f32.mrb[0].mxu0
        %v1523 = vadd.f32 %v1371, %v1522
        %v1524 = vpop.f32.mrb[0].mxu0
        %1525 = vdwg.mxu0
        %v1527 = vsel %vm1373, %v1072, 0
        %v1530 = vsel %vm1373, %v1218, 0
        %1532 = vmatprep.subr.mxu0 0.0
        %1533 = vmatpush1.xpose.msra.mxu0 %v1530
        %1534 = vmatprep.subr.mxu0 0.0
        %1535 = vmatpush1.xpose.msra.mxu0 0.0
        %1536 = vmatprep.subr.mxu0 0.0
        %1537 = vmatpush1.xpose.msra.mxu0 0.0
        %1538 = vmatprep.subr.mxu0 0.0
        %1539 = vmatpush1.xpose.msra.mxu0 0.0
        %1540 = vmatprep.subr.mxu0 0.0
        %1541 = vmatpush1.xpose.msra.mxu0 0.0
        %1542 = vmatprep.subr.mxu0 0.0
        %1543 = vmatpush1.xpose.msra.mxu0 0.0
        %1544 = vmatprep.subr.mxu0 0.0
        %1545 = vmatpush1.xpose.msra.mxu0 0.0
        %1546 = vmatprep.subr.mxu0 0.0
        %1547 = vmatpush1.xpose.msra.mxu0 0.0
        %1548 = vmatprep.subr.mxu0 0.0
        %1549 = vmatpush1.xpose.msra.mxu0 0.0
        %1550 = vmatprep.subr.mxu0 0.0
        %1551 = vmatpush1.xpose.msra.mxu0 0.0
        %1552 = vmatprep.subr.mxu0 0.0
        %1553 = vmatpush1.xpose.msra.mxu0 0.0
        %1554 = vmatprep.subr.mxu0 0.0
        %1555 = vmatpush1.xpose.msra.mxu0 0.0
        %1556 = vmatprep.subr.mxu0 0.0
        %1557 = vmatpush1.xpose.msra.mxu0 0.0
        %1558 = vmatprep.subr.mxu0 0.0
        %1559 = vmatpush1.xpose.msra.mxu0 0.0
        %1560 = vmatprep.subr.mxu0 0.0
        %1561 = vmatpush1.xpose.msra.mxu0 0.0
        %1562 = vmatprep.subr.mxu0 0.0
        %1563 = vmatpush1.xpose.msra.mxu0 0.0
        %1564 = vmatprep.subr.mxu0 0.0
        %1565 = vmatpush1.xpose.msra.mxu0 0.0
        %1566 = vmatprep.subr.mxu0 0.0
        %1567 = vmatpush1.xpose.msra.mxu0 0.0
        %1568 = vmatprep.subr.mxu0 0.0
        %1569 = vmatpush1.xpose.msra.mxu0 0.0
        %1570 = vmatprep.subr.mxu0 0.0
        %1571 = vmatpush1.xpose.msra.mxu0 0.0
        %1572 = vmatprep.subr.mxu0 0.0
        %1573 = vmatpush1.xpose.msra.mxu0 0.0
        %1574 = vmatprep.subr.mxu0 0.0
        %1575 = vmatpush1.xpose.msra.mxu0 0.0
        %1576 = vmatprep.subr.mxu0 0.0
        %1577 = vmatpush1.xpose.msra.mxu0 0.0
        %1578 = vmatprep.subr.mxu0 0.0
        %1579 = vmatpush1.xpose.msra.mxu0 0.0
        %1580 = vmatprep.subr.mxu0 0.0
        %1581 = vmatpush1.xpose.msra.mxu0 0.0
        %1582 = vmatprep.subr.mxu0 0.0
        %1583 = vmatpush1.xpose.msra.mxu0 0.0
        %1584 = vmatprep.subr.mxu0 0.0
        %1585 = vmatpush1.xpose.msra.mxu0 0.0
        %1586 = vmatprep.subr.mxu0 0.0
        %1587 = vmatpush1.xpose.msra.mxu0 0.0
        %1588 = vmatprep.subr.mxu0 0.0
        %1589 = vmatpush1.xpose.msra.mxu0 0.0
        %1590 = vmatprep.subr.mxu0 0.0
        %1591 = vmatpush1.xpose.msra.mxu0 0.0
        %1592 = vmatprep.subr.mxu0 0.0
        %1593 = vmatpush1.xpose.msra.mxu0 0.0
        %1594 = vmatprep.subr.mxu0 0.0
        %1595 = vmatpush1.xpose.msra.mxu0 0.0
        %1596 = vmatprep.mubr.f32.mxu0 0.0
        %1597 = vmatmul.mubr.f32.gmra.mrb[0].mxu0 %v1527
        %v1598 = vpop.f32.mrb[0].mxu0
        %v1599 = vadd.f32 %v1371, %v1598
        %v1600 = vpop.f32.mrb[0].mxu0
        %1601 = vdwg.mxu0
        %v1603 = vsel %vm1373, %v1073, 0
        %v1606 = vsel %vm1373, %v1219, 0
        %1608 = vmatprep.subr.mxu0 0.0
        %1609 = vmatpush1.xpose.msra.mxu0 %v1606
        %1610 = vmatprep.subr.mxu0 0.0
        %1611 = vmatpush1.xpose.msra.mxu0 0.0
        %1612 = vmatprep.subr.mxu0 0.0
        %1613 = vmatpush1.xpose.msra.mxu0 0.0
        %1614 = vmatprep.subr.mxu0 0.0
        %1615 = vmatpush1.xpose.msra.mxu0 0.0
        %1616 = vmatprep.subr.mxu0 0.0
        %1617 = vmatpush1.xpose.msra.mxu0 0.0
        %1618 = vmatprep.subr.mxu0 0.0
        %1619 = vmatpush1.xpose.msra.mxu0 0.0
        %1620 = vmatprep.subr.mxu0 0.0
        %1621 = vmatpush1.xpose.msra.mxu0 0.0
        %1622 = vmatprep.subr.mxu0 0.0
        %1623 = vmatpush1.xpose.msra.mxu0 0.0
        %1624 = vmatprep.subr.mxu0 0.0
        %1625 = vmatpush1.xpose.msra.mxu0 0.0
        %1626 = vmatprep.subr.mxu0 0.0
        %1627 = vmatpush1.xpose.msra.mxu0 0.0
        %1628 = vmatprep.subr.mxu0 0.0
        %1629 = vmatpush1.xpose.msra.mxu0 0.0
        %1630 = vmatprep.subr.mxu0 0.0
        %1631 = vmatpush1.xpose.msra.mxu0 0.0
        %1632 = vmatprep.subr.mxu0 0.0
        %1633 = vmatpush1.xpose.msra.mxu0 0.0
        %1634 = vmatprep.subr.mxu0 0.0
        %1635 = vmatpush1.xpose.msra.mxu0 0.0
        %1636 = vmatprep.subr.mxu0 0.0
        %1637 = vmatpush1.xpose.msra.mxu0 0.0
        %1638 = vmatprep.subr.mxu0 0.0
        %1639 = vmatpush1.xpose.msra.mxu0 0.0
        %1640 = vmatprep.subr.mxu0 0.0
        %1641 = vmatpush1.xpose.msra.mxu0 0.0
        %1642 = vmatprep.subr.mxu0 0.0
        %1643 = vmatpush1.xpose.msra.mxu0 0.0
        %1644 = vmatprep.subr.mxu0 0.0
        %1645 = vmatpush1.xpose.msra.mxu0 0.0
        %1646 = vmatprep.subr.mxu0 0.0
        %1647 = vmatpush1.xpose.msra.mxu0 0.0
        %1648 = vmatprep.subr.mxu0 0.0
        %1649 = vmatpush1.xpose.msra.mxu0 0.0
        %1650 = vmatprep.subr.mxu0 0.0
        %1651 = vmatpush1.xpose.msra.mxu0 0.0
        %1652 = vmatprep.subr.mxu0 0.0
        %1653 = vmatpush1.xpose.msra.mxu0 0.0
        %1654 = vmatprep.subr.mxu0 0.0
        %1655 = vmatpush1.xpose.msra.mxu0 0.0
        %1656 = vmatprep.subr.mxu0 0.0
        %1657 = vmatpush1.xpose.msra.mxu0 0.0
        %1658 = vmatprep.subr.mxu0 0.0
        %1659 = vmatpush1.xpose.msra.mxu0 0.0
        %1660 = vmatprep.subr.mxu0 0.0
        %1661 = vmatpush1.xpose.msra.mxu0 0.0
        %1662 = vmatprep.subr.mxu0 0.0
        %1663 = vmatpush1.xpose.msra.mxu0 0.0
        %1664 = vmatprep.subr.mxu0 0.0
        %1665 = vmatpush1.xpose.msra.mxu0 0.0
        %1666 = vmatprep.subr.mxu0 0.0
        %1667 = vmatpush1.xpose.msra.mxu0 0.0
        %1668 = vmatprep.subr.mxu0 0.0
        %1669 = vmatpush1.xpose.msra.mxu0 0.0
        %1670 = vmatprep.subr.mxu0 0.0
        %1671 = vmatpush1.xpose.msra.mxu0 0.0
        %1672 = vmatprep.mubr.f32.mxu0 0.0
        %1673 = vmatmul.mubr.f32.gmra.mrb[0].mxu0 %v1603
        %v1674 = vpop.f32.mrb[0].mxu0
        %v1675 = vadd.f32 %v1371, %v1674
        %v1676 = vpop.f32.mrb[0].mxu0
        %1677 = vdwg.mxu0
        %v1678 = vsel %vm1373, %v1447, -inf
        %1679 = vmax.xlane.f32.xlu0 %v1678
        %v1680 = vpop.xlane.xlu0 %1679
        %v1681 = vsel %vm1373, %v1523, -inf
        %1682 = vmax.xlane.f32.xlu0 %v1681
        %v1683 = vpop.xlane.xlu0 %1682
        %v1684 = vsel %vm1373, %v1599, -inf
        %1685 = vmax.xlane.f32.xlu0 %v1684
        %v1686 = vpop.xlane.xlu0 %1685
        %v1687 = vsel %vm1373, %v1675, -inf
        %1688 = vmax.xlane.f32.xlu0 %v1687
        %v1689 = vpop.xlane.xlu0 %1688
        %v1690 = vsub.f32 %v1447, %v1680
        %v1691 = vsub.f32 %v1523, %v1683
        %v1692 = vsub.f32 %v1599, %v1686
        %v1693 = vsub.f32 %v1675, %v1689
        %v1694 = vmul.f32 %v1690, 1.442695
        %v1695 = vpow.pop %v1694
        %v1696 = vmul.f32 %v1691, 1.442695
        %v1697 = vpow.pop %v1696
        %v1698 = vmul.f32 %v1692, 1.442695
        %v1699 = vpow.pop %v1698
        %v1700 = vmul.f32 %v1693, 1.442695
        %v1701 = vpow.pop %v1700
        %v1702 = vsel %vm1373, %v1695, 0.0
        %1703 = vadd.xlane.f32.xlu0 %v1702
        %v1704 = vpop.xlane.xlu0 %1703
        %v1705 = vsel %vm1373, %v1697, 0.0
        %1706 = vadd.xlane.f32.xlu0 %v1705
        %v1707 = vpop.xlane.xlu0 %1706
        %v1708 = vsel %vm1373, %v1699, 0.0
        %1709 = vadd.xlane.f32.xlu0 %v1708
        %v1710 = vpop.xlane.xlu0 %1709
        %v1711 = vsel %vm1373, %v1701, 0.0
        %1712 = vadd.xlane.f32.xlu0 %v1711
        %v1713 = vpop.xlane.xlu0 %1712
        %v1714 = vrcp.pop %v1704
        %v1715 = vrcp.pop %v1707
        %v1716 = vrcp.pop %v1710
        %v1717 = vrcp.pop %v1713
        %v1718 = vmul.f32 %v1695, %v1714
        %v1719 = vmul.f32 %v1697, %v1715
        %v1720 = vmul.f32 %v1699, %v1716
        %v1721 = vmul.f32 %v1701, %v1717
        %v1723 = vsel %vm1373, %v1718, 0
        %1725 = vmatprep.subr.mxu0 0.0
        %1726 = vmatpush1.msra.mxu0 %v1362
        %1727 = vmatprep.subr.mxu0 0.0
        %1728 = vmatpush1.msra.mxu0 0.0
        %1729 = vmatprep.subr.mxu0 0.0
        %1730 = vmatpush1.msra.mxu0 0.0
        %1731 = vmatprep.subr.mxu0 0.0
        %1732 = vmatpush1.msra.mxu0 0.0
        %1733 = vmatprep.subr.mxu0 0.0
        %1734 = vmatpush1.msra.mxu0 0.0
        %1735 = vmatprep.subr.mxu0 0.0
        %1736 = vmatpush1.msra.mxu0 0.0
        %1737 = vmatprep.subr.mxu0 0.0
        %1738 = vmatpush1.msra.mxu0 0.0
        %1739 = vmatprep.subr.mxu0 0.0
        %1740 = vmatpush1.msra.mxu0 0.0
        %1741 = vmatprep.subr.mxu0 0.0
        %1742 = vmatpush1.msra.mxu0 0.0
        %1743 = vmatprep.subr.mxu0 0.0
        %1744 = vmatpush1.msra.mxu0 0.0
        %1745 = vmatprep.subr.mxu0 0.0
        %1746 = vmatpush1.msra.mxu0 0.0
        %1747 = vmatprep.subr.mxu0 0.0
        %1748 = vmatpush1.msra.mxu0 0.0
        %1749 = vmatprep.subr.mxu0 0.0
        %1750 = vmatpush1.msra.mxu0 0.0
        %1751 = vmatprep.subr.mxu0 0.0
        %1752 = vmatpush1.msra.mxu0 0.0
        %1753 = vmatprep.subr.mxu0 0.0
        %1754 = vmatpush1.msra.mxu0 0.0
        %1755 = vmatprep.subr.mxu0 0.0
        %1756 = vmatpush1.msra.mxu0 0.0
        %1757 = vmatprep.subr.mxu0 0.0
        %1758 = vmatpush1.msra.mxu0 0.0
        %1759 = vmatprep.subr.mxu0 0.0
        %1760 = vmatpush1.msra.mxu0 0.0
        %1761 = vmatprep.subr.mxu0 0.0
        %1762 = vmatpush1.msra.mxu0 0.0
        %1763 = vmatprep.subr.mxu0 0.0
        %1764 = vmatpush1.msra.mxu0 0.0
        %1765 = vmatprep.subr.mxu0 0.0
        %1766 = vmatpush1.msra.mxu0 0.0
        %1767 = vmatprep.subr.mxu0 0.0
        %1768 = vmatpush1.msra.mxu0 0.0
        %1769 = vmatprep.subr.mxu0 0.0
        %1770 = vmatpush1.msra.mxu0 0.0
        %1771 = vmatprep.subr.mxu0 0.0
        %1772 = vmatpush1.msra.mxu0 0.0
        %1773 = vmatprep.subr.mxu0 0.0
        %1774 = vmatpush1.msra.mxu0 0.0
        %1775 = vmatprep.subr.mxu0 0.0
        %1776 = vmatpush1.msra.mxu0 0.0
        %1777 = vmatprep.subr.mxu0 0.0
        %1778 = vmatpush1.msra.mxu0 0.0
        %1779 = vmatprep.subr.mxu0 0.0
        %1780 = vmatpush1.msra.mxu0 0.0
        %1781 = vmatprep.subr.mxu0 0.0
        %1782 = vmatpush1.msra.mxu0 0.0
        %1783 = vmatprep.subr.mxu0 0.0
        %1784 = vmatpush1.msra.mxu0 0.0
        %1785 = vmatprep.subr.mxu0 0.0
        %1786 = vmatpush1.msra.mxu0 0.0
        %1787 = vmatprep.subr.mxu0 0.0
        %1788 = vmatpush1.msra.mxu0 0.0
        %1789 = vmatprep.mubr.f32.mxu0 0.0
        %1790 = vmatmul.mubr.f32.gmra.mrb[0].mxu0 %v1723
        %v1791 = vpop.f32.mrb[0].mxu0
        %v1792 = vadd.f32 0.0, %v1791
        %v1793 = vpop.f32.mrb[0].mxu0
        %1794 = vdwg.mxu0
        %v1796 = vsel %vm1373, %v1719, 0
        %1798 = vmatprep.subr.mxu0 0.0
        %1799 = vmatpush1.msra.mxu0 %v1363
        %1800 = vmatprep.subr.mxu0 0.0
        %1801 = vmatpush1.msra.mxu0 0.0
        %1802 = vmatprep.subr.mxu0 0.0
        %1803 = vmatpush1.msra.mxu0 0.0
        %1804 = vmatprep.subr.mxu0 0.0
        %1805 = vmatpush1.msra.mxu0 0.0
        %1806 = vmatprep.subr.mxu0 0.0
        %1807 = vmatpush1.msra.mxu0 0.0
        %1808 = vmatprep.subr.mxu0 0.0
        %1809 = vmatpush1.msra.mxu0 0.0
        %1810 = vmatprep.subr.mxu0 0.0
        %1811 = vmatpush1.msra.mxu0 0.0
        %1812 = vmatprep.subr.mxu0 0.0
        %1813 = vmatpush1.msra.mxu0 0.0
        %1814 = vmatprep.subr.mxu0 0.0
        %1815 = vmatpush1.msra.mxu0 0.0
        %1816 = vmatprep.subr.mxu0 0.0
        %1817 = vmatpush1.msra.mxu0 0.0
        %1818 = vmatprep.subr.mxu0 0.0
        %1819 = vmatpush1.msra.mxu0 0.0
        %1820 = vmatprep.subr.mxu0 0.0
        %1821 = vmatpush1.msra.mxu0 0.0
        %1822 = vmatprep.subr.mxu0 0.0
        %1823 = vmatpush1.msra.mxu0 0.0
        %1824 = vmatprep.subr.mxu0 0.0
        %1825 = vmatpush1.msra.mxu0 0.0
        %1826 = vmatprep.subr.mxu0 0.0
        %1827 = vmatpush1.msra.mxu0 0.0
        %1828 = vmatprep.subr.mxu0 0.0
        %1829 = vmatpush1.msra.mxu0 0.0
        %1830 = vmatprep.subr.mxu0 0.0
        %1831 = vmatpush1.msra.mxu0 0.0
        %1832 = vmatprep.subr.mxu0 0.0
        %1833 = vmatpush1.msra.mxu0 0.0
        %1834 = vmatprep.subr.mxu0 0.0
        %1835 = vmatpush1.msra.mxu0 0.0
        %1836 = vmatprep.subr.mxu0 0.0
        %1837 = vmatpush1.msra.mxu0 0.0
        %1838 = vmatprep.subr.mxu0 0.0
        %1839 = vmatpush1.msra.mxu0 0.0
        %1840 = vmatprep.subr.mxu0 0.0
        %1841 = vmatpush1.msra.mxu0 0.0
        %1842 = vmatprep.subr.mxu0 0.0
        %1843 = vmatpush1.msra.mxu0 0.0
        %1844 = vmatprep.subr.mxu0 0.0
        %1845 = vmatpush1.msra.mxu0 0.0
        %1846 = vmatprep.subr.mxu0 0.0
        %1847 = vmatpush1.msra.mxu0 0.0
        %1848 = vmatprep.subr.mxu0 0.0
        %1849 = vmatpush1.msra.mxu0 0.0
        %1850 = vmatprep.subr.mxu0 0.0
        %1851 = vmatpush1.msra.mxu0 0.0
        %1852 = vmatprep.subr.mxu0 0.0
        %1853 = vmatpush1.msra.mxu0 0.0
        %1854 = vmatprep.subr.mxu0 0.0
        %1855 = vmatpush1.msra.mxu0 0.0
        %1856 = vmatprep.subr.mxu0 0.0
        %1857 = vmatpush1.msra.mxu0 0.0
        %1858 = vmatprep.subr.mxu0 0.0
        %1859 = vmatpush1.msra.mxu0 0.0
        %1860 = vmatprep.subr.mxu0 0.0
        %1861 = vmatpush1.msra.mxu0 0.0
        %1862 = vmatprep.mubr.f32.mxu0 0.0
        %1863 = vmatmul.mubr.f32.gmra.mrb[0].mxu0 %v1796
        %v1864 = vpop.f32.mrb[0].mxu0
        %v1865 = vadd.f32 0.0, %v1864
        %v1866 = vpop.f32.mrb[0].mxu0
        %1867 = vdwg.mxu0
        %v1869 = vsel %vm1373, %v1720, 0
        %1871 = vmatprep.subr.mxu0 0.0
        %1872 = vmatpush1.msra.mxu0 %v1364
        %1873 = vmatprep.subr.mxu0 0.0
        %1874 = vmatpush1.msra.mxu0 0.0
        %1875 = vmatprep.subr.mxu0 0.0
        %1876 = vmatpush1.msra.mxu0 0.0
        %1877 = vmatprep.subr.mxu0 0.0
        %1878 = vmatpush1.msra.mxu0 0.0
        %1879 = vmatprep.subr.mxu0 0.0
        %1880 = vmatpush1.msra.mxu0 0.0
        %1881 = vmatprep.subr.mxu0 0.0
        %1882 = vmatpush1.msra.mxu0 0.0
        %1883 = vmatprep.subr.mxu0 0.0
        %1884 = vmatpush1.msra.mxu0 0.0
        %1885 = vmatprep.subr.mxu0 0.0
        %1886 = vmatpush1.msra.mxu0 0.0
        %1887 = vmatprep.subr.mxu0 0.0
        %1888 = vmatpush1.msra.mxu0 0.0
        %1889 = vmatprep.subr.mxu0 0.0
        %1890 = vmatpush1.msra.mxu0 0.0
        %1891 = vmatprep.subr.mxu0 0.0
        %1892 = vmatpush1.msra.mxu0 0.0
        %1893 = vmatprep.subr.mxu0 0.0
        %1894 = vmatpush1.msra.mxu0 0.0
        %1895 = vmatprep.subr.mxu0 0.0
        %1896 = vmatpush1.msra.mxu0 0.0
        %1897 = vmatprep.subr.mxu0 0.0
        %1898 = vmatpush1.msra.mxu0 0.0
        %1899 = vmatprep.subr.mxu0 0.0
        %1900 = vmatpush1.msra.mxu0 0.0
        %1901 = vmatprep.subr.mxu0 0.0
        %1902 = vmatpush1.msra.mxu0 0.0
        %1903 = vmatprep.subr.mxu0 0.0
        %1904 = vmatpush1.msra.mxu0 0.0
        %1905 = vmatprep.subr.mxu0 0.0
        %1906 = vmatpush1.msra.mxu0 0.0
        %1907 = vmatprep.subr.mxu0 0.0
        %1908 = vmatpush1.msra.mxu0 0.0
        %1909 = vmatprep.subr.mxu0 0.0
        %1910 = vmatpush1.msra.mxu0 0.0
        %1911 = vmatprep.subr.mxu0 0.0
        %1912 = vmatpush1.msra.mxu0 0.0
        %1913 = vmatprep.subr.mxu0 0.0
        %1914 = vmatpush1.msra.mxu0 0.0
        %1915 = vmatprep.subr.mxu0 0.0
        %1916 = vmatpush1.msra.mxu0 0.0
        %1917 = vmatprep.subr.mxu0 0.0
        %1918 = vmatpush1.msra.mxu0 0.0
        %1919 = vmatprep.subr.mxu0 0.0
        %1920 = vmatpush1.msra.mxu0 0.0
        %1921 = vmatprep.subr.mxu0 0.0
        %1922 = vmatpush1.msra.mxu0 0.0
        %1923 = vmatprep.subr.mxu0 0.0
        %1924 = vmatpush1.msra.mxu0 0.0
        %1925 = vmatprep.subr.mxu0 0.0
        %1926 = vmatpush1.msra.mxu0 0.0
        %1927 = vmatprep.subr.mxu0 0.0
        %1928 = vmatpush1.msra.mxu0 0.0
        %1929 = vmatprep.subr.mxu0 0.0
        %1930 = vmatpush1.msra.mxu0 0.0
        %1931 = vmatprep.subr.mxu0 0.0
        %1932 = vmatpush1.msra.mxu0 0.0
        %1933 = vmatprep.subr.mxu0 0.0
        %1934 = vmatpush1.msra.mxu0 0.0
        %1935 = vmatprep.mubr.f32.mxu0 0.0
        %1936 = vmatmul.mubr.f32.gmra.mrb[0].mxu0 %v1869
        %v1937 = vpop.f32.mrb[0].mxu0
        %v1938 = vadd.f32 0.0, %v1937
        %v1939 = vpop.f32.mrb[0].mxu0
        %1940 = vdwg.mxu0
        %v1942 = vsel %vm1373, %v1721, 0
        %1944 = vmatprep.subr.mxu0 0.0
        %1945 = vmatpush1.msra.mxu0 %v1365
        %1946 = vmatprep.subr.mxu0 0.0
        %1947 = vmatpush1.msra.mxu0 0.0
        %1948 = vmatprep.subr.mxu0 0.0
        %1949 = vmatpush1.msra.mxu0 0.0
        %1950 = vmatprep.subr.mxu0 0.0
        %1951 = vmatpush1.msra.mxu0 0.0
        %1952 = vmatprep.subr.mxu0 0.0
        %1953 = vmatpush1.msra.mxu0 0.0
        %1954 = vmatprep.subr.mxu0 0.0
        %1955 = vmatpush1.msra.mxu0 0.0
        %1956 = vmatprep.subr.mxu0 0.0
        %1957 = vmatpush1.msra.mxu0 0.0
        %1958 = vmatprep.subr.mxu0 0.0
        %1959 = vmatpush1.msra.mxu0 0.0
        %1960 = vmatprep.subr.mxu0 0.0
        %1961 = vmatpush1.msra.mxu0 0.0
        %1962 = vmatprep.subr.mxu0 0.0
        %1963 = vmatpush1.msra.mxu0 0.0
        %1964 = vmatprep.subr.mxu0 0.0
        %1965 = vmatpush1.msra.mxu0 0.0
        %1966 = vmatprep.subr.mxu0 0.0
        %1967 = vmatpush1.msra.mxu0 0.0
        %1968 = vmatprep.subr.mxu0 0.0
        %1969 = vmatpush1.msra.mxu0 0.0
        %1970 = vmatprep.subr.mxu0 0.0
        %1971 = vmatpush1.msra.mxu0 0.0
        %1972 = vmatprep.subr.mxu0 0.0
        %1973 = vmatpush1.msra.mxu0 0.0
        %1974 = vmatprep.subr.mxu0 0.0
        %1975 = vmatpush1.msra.mxu0 0.0
        %1976 = vmatprep.subr.mxu0 0.0
        %1977 = vmatpush1.msra.mxu0 0.0
        %1978 = vmatprep.subr.mxu0 0.0
        %1979 = vmatpush1.msra.mxu0 0.0
        %1980 = vmatprep.subr.mxu0 0.0
        %1981 = vmatpush1.msra.mxu0 0.0
        %1982 = vmatprep.subr.mxu0 0.0
        %1983 = vmatpush1.msra.mxu0 0.0
        %1984 = vmatprep.subr.mxu0 0.0
        %1985 = vmatpush1.msra.mxu0 0.0
        %1986 = vmatprep.subr.mxu0 0.0
        %1987 = vmatpush1.msra.mxu0 0.0
        %1988 = vmatprep.subr.mxu0 0.0
        %1989 = vmatpush1.msra.mxu0 0.0
        %1990 = vmatprep.subr.mxu0 0.0
        %1991 = vmatpush1.msra.mxu0 0.0
        %1992 = vmatprep.subr.mxu0 0.0
        %1993 = vmatpush1.msra.mxu0 0.0
        %1994 = vmatprep.subr.mxu0 0.0
        %1995 = vmatpush1.msra.mxu0 0.0
        %1996 = vmatprep.subr.mxu0 0.0
        %1997 = vmatpush1.msra.mxu0 0.0
        %1998 = vmatprep.subr.mxu0 0.0
        %1999 = vmatpush1.msra.mxu0 0.0
        %2000 = vmatprep.subr.mxu0 0.0
        %2001 = vmatpush1.msra.mxu0 0.0
        %2002 = vmatprep.subr.mxu0 0.0
        %2003 = vmatpush1.msra.mxu0 0.0
        %2004 = vmatprep.subr.mxu0 0.0
        %2005 = vmatpush1.msra.mxu0 0.0
        %2006 = vmatprep.subr.mxu0 0.0
        %2007 = vmatpush1.msra.mxu0 0.0
        %2008 = vmatprep.mubr.f32.mxu0 0.0
        %2009 = vmatmul.mubr.f32.gmra.mrb[0].mxu0 %v1942
        %v2010 = vpop.f32.mrb[0].mxu0
        %v2011 = vadd.f32 0.0, %v2010
        %v2012 = vpop.f32.mrb[0].mxu0
        %2013 = vdwg.mxu0
        %v2014 = vcombine.low %v1792, %v1938
        %v2015 = vcombine.high %v1792, %v1938
        %v2017 = vunpack.c.l.s4 1983009808
        %v2018 = vunpack.c.0.s8 %v2017
        %v2019 = vlaneseq
        %v2020 = vshrl.u32 %v2019, 7
        %v2021 = vsub.s32 %v2018, %v2020
        %v2022 = vrot.slane %v2014, %v2021
        %v2024 = vunpack.c.l.s4 1983009808
        %v2025 = vunpack.c.0.s8 %v2024
        %v2026 = vlaneseq
        %v2027 = vshrl.u32 %v2026, 7
        %v2028 = vsub.s32 %v2025, %v2027
        %v2029 = vrot.slane %v2015, %v2028
        %v2030 = vcombine.low %v1865, %v2011
        %v2031 = vcombine.high %v1865, %v2011
        %v2033 = vunpack.c.l.s4 1983009808
        %v2034 = vunpack.c.0.s8 %v2033
        %v2035 = vlaneseq
        %v2036 = vshrl.u32 %v2035, 7
        %v2037 = vsub.s32 %v2034, %v2036
        %v2038 = vrot.slane %v2030, %v2037
        %v2040 = vunpack.c.l.s4 1983009808
        %v2041 = vunpack.c.0.s8 %v2040
        %v2042 = vlaneseq
        %v2043 = vshrl.u32 %v2042, 7
        %v2044 = vsub.s32 %v2041, %v2043
        %v2045 = vrot.slane %v2031, %v2044
        %v2046 = vcombine.low %v2022, %v2038
        %v2047 = vcombine.high %v2022, %v2038
        %v2049 = vunpack.c.l.s4 1934713408
        %v2050 = vunpack.c.0.s8 %v2049
        %v2051 = vlaneseq
        %v2052 = vshrl.u32 %v2051, 7
        %v2053 = vsub.s32 %v2050, %v2052
        %v2054 = vrot.slane %v2046, %v2053
        %v2056 = vunpack.c.l.s4 1934713408
        %v2057 = vunpack.c.0.s8 %v2056
        %v2058 = vlaneseq
        %v2059 = vshrl.u32 %v2058, 7
        %v2060 = vsub.s32 %v2057, %v2059
        %v2061 = vrot.slane %v2047, %v2060
        %v2062 = vcombine.low %v2029, %v2045
        %v2063 = vcombine.high %v2029, %v2045
        %v2065 = vunpack.c.l.s4 1934713408
        %v2066 = vunpack.c.0.s8 %v2065
        %v2067 = vlaneseq
        %v2068 = vshrl.u32 %v2067, 7
        %v2069 = vsub.s32 %v2066, %v2068
        %v2070 = vrot.slane %v2062, %v2069
        %v2072 = vunpack.c.l.s4 1934713408
        %v2073 = vunpack.c.0.s8 %v2072
        %v2074 = vlaneseq
        %v2075 = vshrl.u32 %v2074, 7
        %v2076 = vsub.s32 %v2073, %v2075
        %v2077 = vrot.slane %v2063, %v2076
        %v2078 = vcombine.high %v2054, 0.0
        %v2079 = vcombine.high %v2061, 0.0
        %v2080 = vcombine.high %v2070, 0.0
        %v2081 = vcombine.high %v2077, 0.0
        %v2082 = vcombine.low %v2054, %v2061
        %v2084 = vunpack.c.l.s4 1983009808
        %v2085 = vunpack.c.0.s8 %v2084
        %v2086 = vlaneseq
        %v2087 = vshrl.u32 %v2086, 7
        %v2088 = vsub.s32 %v2085, %v2087
        %v2089 = vrot.slane %v2082, %v2088
        %v2090 = vcombine.low %v2078, %v2079
        %v2092 = vunpack.c.l.s4 1983009808
        %v2093 = vunpack.c.0.s8 %v2092
        %v2094 = vlaneseq
        %v2095 = vshrl.u32 %v2094, 7
        %v2096 = vsub.s32 %v2093, %v2095
        %v2097 = vrot.slane %v2090, %v2096
        %v2098 = vcombine.low %v2070, %v2077
        %v2100 = vunpack.c.l.s4 1983009808
        %v2101 = vunpack.c.0.s8 %v2100
        %v2102 = vlaneseq
        %v2103 = vshrl.u32 %v2102, 7
        %v2104 = vsub.s32 %v2101, %v2103
        %v2105 = vrot.slane %v2098, %v2104
        %v2106 = vcombine.low %v2080, %v2081
        %v2108 = vunpack.c.l.s4 1983009808
        %v2109 = vunpack.c.0.s8 %v2108
        %v2110 = vlaneseq
        %v2111 = vshrl.u32 %v2110, 7
        %v2112 = vsub.s32 %v2109, %v2111
        %v2113 = vrot.slane %v2106, %v2112
        %v2114 = vcombine.low %v2089, %v2097
        %v2115 = vcombine.high %v2089, %v2097
        %v2117 = vunpack.c.l.s4 1934713408
        %v2118 = vunpack.c.0.s8 %v2117
        %v2119 = vlaneseq
        %v2120 = vshrl.u32 %v2119, 7
        %v2121 = vsub.s32 %v2118, %v2120
        %v2122 = vrot.slane %v2114, %v2121
        %v2124 = vunpack.c.l.s4 1934713408
        %v2125 = vunpack.c.0.s8 %v2124
        %v2126 = vlaneseq
        %v2127 = vshrl.u32 %v2126, 7
        %v2128 = vsub.s32 %v2125, %v2127
        %v2129 = vrot.slane %v2115, %v2128
        %v2130 = vcombine.low %v2105, %v2113
        %v2131 = vcombine.high %v2105, %v2113
        %v2133 = vunpack.c.l.s4 1934713408
        %v2134 = vunpack.c.0.s8 %v2133
        %v2135 = vlaneseq
        %v2136 = vshrl.u32 %v2135, 7
        %v2137 = vsub.s32 %v2134, %v2136
        %v2138 = vrot.slane %v2130, %v2137
        %v2140 = vunpack.c.l.s4 1934713408
        %v2141 = vunpack.c.0.s8 %v2140
        %v2142 = vlaneseq
        %v2143 = vshrl.u32 %v2142, 7
        %v2144 = vsub.s32 %v2141, %v2143
        %v2145 = vrot.slane %v2131, %v2144
        %v2146 = vcombine.low %v2122, %v2138
        %v2147 = vcombine.high %v2122, %v2138
        %v2148 = vcombine.low %v2129, %v2145
        %v2149 = vcombine.high %v2129, %v2145
        %2151 = vrot.lane.b32.xlu0 %v2147, 8
        %v2152 = vpop.permute.xlu0 %2151
        %2155 = vrot.lane.b32.xlu0 %v2148, 16
        %v2156 = vpop.permute.xlu0 %2155
        %2159 = vrot.lane.b32.xlu0 %v2149, 24
        %v2160 = vpop.permute.xlu0 %2159
        %v2162 = vsel %vm1373, %v2146, %v2152
        %vm2163 = vcmask 130048
        %v2164 = vsel %vm2163, %v2162, %v2156
        %vm2165 = vcmask 195584
        %v2166 = vsel %vm2165, %v2164, %v2160
        %v2167 = vld [vmem:[#allocation10] sm:$0xff]
        %v2168 = vld [vmem:[#allocation10 + $0x8] sm:$0xff]
        %v2169 = vld [vmem:[#allocation10 + $0x10] sm:$0xff]
        %v2170 = vld [vmem:[#allocation10 + $0x18] sm:$0xff]
        %v2171 = vld [vmem:[%s9] sm:$0x1]
        %v2173 = vlaneseq
        %v2174 = vshrl.u32 %v2173, 7
        %v2175 = vsub.s32 0, %v2174
        %v2176 = vrot.slane %v2171, %v2175
        %v2179 = vsel %vm691, %v2166, 0
        %2181 = vmatprep.subr.mxu0 0.0
        %2182 = vmatpush1.msra.mxu0 %v2167
        %2183 = vmatprep.subr.mxu0 0.0
        %2184 = vmatpush1.msra.mxu0 %v2168
        %2185 = vmatprep.subr.mxu0 0.0
        %2186 = vmatpush1.msra.mxu0 %v2169
        %2187 = vmatprep.subr.mxu0 0.0
        %2188 = vmatpush1.msra.mxu0 %v2170
        %2189 = vmatprep.subr.mxu0 0.0
        %2190 = vmatpush1.msra.mxu0 0.0
        %2191 = vmatprep.subr.mxu0 0.0
        %2192 = vmatpush1.msra.mxu0 0.0
        %2193 = vmatprep.subr.mxu0 0.0
        %2194 = vmatpush1.msra.mxu0 0.0
        %2195 = vmatprep.subr.mxu0 0.0
        %2196 = vmatpush1.msra.mxu0 0.0
        %2197 = vmatprep.subr.mxu0 0.0
        %2198 = vmatpush1.msra.mxu0 0.0
        %2199 = vmatprep.subr.mxu0 0.0
        %2200 = vmatpush1.msra.mxu0 0.0
        %2201 = vmatprep.subr.mxu0 0.0
        %2202 = vmatpush1.msra.mxu0 0.0
        %2203 = vmatprep.subr.mxu0 0.0
        %2204 = vmatpush1.msra.mxu0 0.0
        %2205 = vmatprep.subr.mxu0 0.0
        %2206 = vmatpush1.msra.mxu0 0.0
        %2207 = vmatprep.subr.mxu0 0.0
        %2208 = vmatpush1.msra.mxu0 0.0
        %2209 = vmatprep.subr.mxu0 0.0
        %2210 = vmatpush1.msra.mxu0 0.0
        %2211 = vmatprep.subr.mxu0 0.0
        %2212 = vmatpush1.msra.mxu0 0.0
        %2213 = vmatprep.subr.mxu0 0.0
        %2214 = vmatpush1.msra.mxu0 0.0
        %2215 = vmatprep.subr.mxu0 0.0
        %2216 = vmatpush1.msra.mxu0 0.0
        %2217 = vmatprep.subr.mxu0 0.0
        %2218 = vmatpush1.msra.mxu0 0.0
        %2219 = vmatprep.subr.mxu0 0.0
        %2220 = vmatpush1.msra.mxu0 0.0
        %2221 = vmatprep.subr.mxu0 0.0
        %2222 = vmatpush1.msra.mxu0 0.0
        %2223 = vmatprep.subr.mxu0 0.0
        %2224 = vmatpush1.msra.mxu0 0.0
        %2225 = vmatprep.subr.mxu0 0.0
        %2226 = vmatpush1.msra.mxu0 0.0
        %2227 = vmatprep.subr.mxu0 0.0
        %2228 = vmatpush1.msra.mxu0 0.0
        %2229 = vmatprep.subr.mxu0 0.0
        %2230 = vmatpush1.msra.mxu0 0.0
        %2231 = vmatprep.subr.mxu0 0.0
        %2232 = vmatpush1.msra.mxu0 0.0
        %2233 = vmatprep.subr.mxu0 0.0
        %2234 = vmatpush1.msra.mxu0 0.0
        %2235 = vmatprep.subr.mxu0 0.0
        %2236 = vmatpush1.msra.mxu0 0.0
        %2237 = vmatprep.subr.mxu0 0.0
        %2238 = vmatpush1.msra.mxu0 0.0
        %2239 = vmatprep.subr.mxu0 0.0
        %2240 = vmatpush1.msra.mxu0 0.0
        %2241 = vmatprep.subr.mxu0 0.0
        %2242 = vmatpush1.msra.mxu0 0.0
        %2243 = vmatprep.subr.mxu0 0.0
        %2244 = vmatpush1.msra.mxu0 0.0
        %2245 = vmatprep.mubr.f32.mxu0 0.0
        %2246 = vmatmul.mubr.f32.gmra.mrb[0].mxu0 %v2179
        %v2247 = vpop.f32.mrb[0].mxu0
        %v2248 = vadd.f32 %v2176, %v2247
        %v2249 = vpop.f32.mrb[0].mxu0
        %2250 = vdwg.mxu0
        %v2251 = vadd.f32 %v2248, %v678
        %v2252 = vld [vmem:[%s10] sm:$0x1]
        %v2253 = vld [vmem:[%s11] sm:$0x1]
        %v2254 = vsel %vm691, %v2251, 0.0
        %2255 = vadd.xlane.f32.xlu0 %v2254
        %v2256 = vpop.xlane.xlu0 %2255
        %v2257 = vrcp.pop 32.0
        %v2258 = vmul.f32 %v2256, %v2257
        %v2259 = vsub.f32 %v2251, %v2258
        %v2260 = vmul.f32 %v2259, %v2259
        %v2261 = vsel %vm691, %v2260, 0.0
        %2262 = vadd.xlane.f32.xlu0 %v2261
        %v2263 = vpop.xlane.xlu0 %2262
        %v2264 = vmul.f32 %v2263, %v2257
        %v2265 = vadd.f32 %v2264, 1e-05
        %v2266 = vrsqrt.pop %v2265
        %v2267 = vmul.f32 %v2259, %v2266
        %v2269 = vlaneseq
        %v2270 = vshrl.u32 %v2269, 7
        %v2271 = vsub.s32 0, %v2270
        %v2272 = vrot.slane %v2252, %v2271
        %v2274 = vmul.f32 %v2267, %v2272
        %v2276 = vlaneseq
        %v2277 = vshrl.u32 %v2276, 7
        %v2278 = vsub.s32 0, %v2277
        %v2279 = vrot.slane %v2253, %v2278
        %v2281 = vadd.f32 %v2274, %v2279
        %v2282 = vld [vmem:[%s12] sm:$0xff]
        %v2283 = vld [vmem:[%s12 + $0x8] sm:$0xff]
        %v2284 = vld [vmem:[%s12 + $0x10] sm:$0xff]
        %v2285 = vld [vmem:[%s12 + $0x18] sm:$0xff]
        %v2286 = vld [vmem:[%s13] sm:$0x1]
        %v2288 = vlaneseq
        %v2289 = vshrl.u32 %v2288, 7
        %v2290 = vsub.s32 0, %v2289
        %v2291 = vrot.slane %v2286, %v2290
        %v2294 = vsel %vm691, %v2281, 0
        %2296 = vmatprep.subr.mxu0 0.0
        %2297 = vmatpush1.msra.mxu0 %v2282
        %2298 = vmatprep.subr.mxu0 0.0
        %2299 = vmatpush1.msra.mxu0 %v2283
        %2300 = vmatprep.subr.mxu0 0.0
        %2301 = vmatpush1.msra.mxu0 %v2284
        %2302 = vmatprep.subr.mxu0 0.0
        %2303 = vmatpush1.msra.mxu0 %v2285
        %2304 = vmatprep.subr.mxu0 0.0
        %2305 = vmatpush1.msra.mxu0 0.0
        %2306 = vmatprep.subr.mxu0 0.0
        %2307 = vmatpush1.msra.mxu0 0.0
        %2308 = vmatprep.subr.mxu0 0.0
        %2309 = vmatpush1.msra.mxu0 0.0
        %2310 = vmatprep.subr.mxu0 0.0
        %2311 = vmatpush1.msra.mxu0 0.0
        %2312 = vmatprep.subr.mxu0 0.0
        %2313 = vmatpush1.msra.mxu0 0.0
        %2314 = vmatprep.subr.mxu0 0.0
        %2315 = vmatpush1.msra.mxu0 0.0
        %2316 = vmatprep.subr.mxu0 0.0
        %2317 = vmatpush1.msra.mxu0 0.0
        %2318 = vmatprep.subr.mxu0 0.0
        %2319 = vmatpush1.msra.mxu0 0.0
        %2320 = vmatprep.subr.mxu0 0.0
        %2321 = vmatpush1.msra.mxu0 0.0
        %2322 = vmatprep.subr.mxu0 0.0
        %2323 = vmatpush1.msra.mxu0 0.0
        %2324 = vmatprep.subr.mxu0 0.0
        %2325 = vmatpush1.msra.mxu0 0.0
        %2326 = vmatprep.subr.mxu0 0.0
        %2327 = vmatpush1.msra.mxu0 0.0
        %2328 = vmatprep.subr.mxu0 0.0
        %2329 = vmatpush1.msra.mxu0 0.0
        %2330 = vmatprep.subr.mxu0 0.0
        %2331 = vmatpush1.msra.mxu0 0.0
        %2332 = vmatprep.subr.mxu0 0.0
        %2333 = vmatpush1.msra.mxu0 0.0
        %2334 = vmatprep.subr.mxu0 0.0
        %2335 = vmatpush1.msra.mxu0 0.0
        %2336 = vmatprep.subr.mxu0 0.0
        %2337 = vmatpush1.msra.mxu0 0.0
        %2338 = vmatprep.subr.mxu0 0.0
        %2339 = vmatpush1.msra.mxu0 0.0
        %2340 = vmatprep.subr.mxu0 0.0
        %2341 = vmatpush1.msra.mxu0 0.0
        %2342 = vmatprep.subr.mxu0 0.0
        %2343 = vmatpush1.msra.mxu0 0.0
        %2344 = vmatprep.subr.mxu0 0.0
        %2345 = vmatpush1.msra.mxu0 0.0
        %2346 = vmatprep.subr.mxu0 0.0
        %2347 = vmatpush1.msra.mxu0 0.0
        %2348 = vmatprep.subr.mxu0 0.0
        %2349 = vmatpush1.msra.mxu0 0.0
        %2350 = vmatprep.subr.mxu0 0.0
        %2351 = vmatpush1.msra.mxu0 0.0
        %2352 = vmatprep.subr.mxu0 0.0
        %2353 = vmatpush1.msra.mxu0 0.0
        %2354 = vmatprep.subr.mxu0 0.0
        %2355 = vmatpush1.msra.mxu0 0.0
        %2356 = vmatprep.subr.mxu0 0.0
        %2357 = vmatpush1.msra.mxu0 0.0
        %2358 = vmatprep.subr.mxu0 0.0
        %2359 = vmatpush1.msra.mxu0 0.0
        %2360 = vmatprep.mubr.f32.mxu0 0.0
        %2361 = vmatmul.mubr.f32.gmra.mrb[0].mxu0 %v2294
        %v2362 = vpop.f32.mrb[0].mxu0
        %v2363 = vadd.f32 %v2291, %v2362
        %v2364 = vpop.f32.mrb[0].mxu0
        %2365 = vdwg.mxu0
        %v2366 = vmul.f32 %v2363, 0.5
        %v2367 = vmul.f32 %v2363, 0.70710677
        %v2368 = verf.f32.pop %v2367
        %v2369 = vadd.f32 %v2368, 1.0
        %v2370 = vmul.f32 %v2366, %v2369
        %v2371 = vld [vmem:[#allocation11] sm:$0xff]
        %v2372 = vld [vmem:[#allocation11 + $0x8] sm:$0xff]
        %v2373 = vld [vmem:[#allocation11 + $0x10] sm:$0xff]
        %v2374 = vld [vmem:[#allocation11 + $0x18] sm:$0xff]
        %v2375 = vld [vmem:[%s15] sm:$0x1]
        %v2377 = vlaneseq
        %v2378 = vshrl.u32 %v2377, 7
        %v2379 = vsub.s32 0, %v2378
        %v2380 = vrot.slane %v2375, %v2379
        %v2383 = vsel %vm691, %v2370, 0
        %2385 = vmatprep.subr.mxu0 0.0
        %2386 = vmatpush1.msra.mxu0 %v2371
        %2387 = vmatprep.subr.mxu0 0.0
        %2388 = vmatpush1.msra.mxu0 %v2372
        %2389 = vmatprep.subr.mxu0 0.0
        %2390 = vmatpush1.msra.mxu0 %v2373
        %2391 = vmatprep.subr.mxu0 0.0
        %2392 = vmatpush1.msra.mxu0 %v2374
        %2393 = vmatprep.subr.mxu0 0.0
        %2394 = vmatpush1.msra.mxu0 0.0
        %2395 = vmatprep.subr.mxu0 0.0
        %2396 = vmatpush1.msra.mxu0 0.0
        %2397 = vmatprep.subr.mxu0 0.0
        %2398 = vmatpush1.msra.mxu0 0.0
        %2399 = vmatprep.subr.mxu0 0.0
        %2400 = vmatpush1.msra.mxu0 0.0
        %2401 = vmatprep.subr.mxu0 0.0
        %2402 = vmatpush1.msra.mxu0 0.0
        %2403 = vmatprep.subr.mxu0 0.0
        %2404 = vmatpush1.msra.mxu0 0.0
        %2405 = vmatprep.subr.mxu0 0.0
        %2406 = vmatpush1.msra.mxu0 0.0
        %2407 = vmatprep.subr.mxu0 0.0
        %2408 = vmatpush1.msra.mxu0 0.0
        %2409 = vmatprep.subr.mxu0 0.0
        %2410 = vmatpush1.msra.mxu0 0.0
        %2411 = vmatprep.subr.mxu0 0.0
        %2412 = vmatpush1.msra.mxu0 0.0
        %2413 = vmatprep.subr.mxu0 0.0
        %2414 = vmatpush1.msra.mxu0 0.0
        %2415 = vmatprep.subr.mxu0 0.0
        %2416 = vmatpush1.msra.mxu0 0.0
        %2417 = vmatprep.subr.mxu0 0.0
        %2418 = vmatpush1.msra.mxu0 0.0
        %2419 = vmatprep.subr.mxu0 0.0
        %2420 = vmatpush1.msra.mxu0 0.0
        %2421 = vmatprep.subr.mxu0 0.0
        %2422 = vmatpush1.msra.mxu0 0.0
        %2423 = vmatprep.subr.mxu0 0.0
        %2424 = vmatpush1.msra.mxu0 0.0
        %2425 = vmatprep.subr.mxu0 0.0
        %2426 = vmatpush1.msra.mxu0 0.0
        %2427 = vmatprep.subr.mxu0 0.0
        %2428 = vmatpush1.msra.mxu0 0.0
        %2429 = vmatprep.subr.mxu0 0.0
        %2430 = vmatpush1.msra.mxu0 0.0
        %2431 = vmatprep.subr.mxu0 0.0
        %2432 = vmatpush1.msra.mxu0 0.0
        %2433 = vmatprep.subr.mxu0 0.0
        %2434 = vmatpush1.msra.mxu0 0.0
        %2435 = vmatprep.subr.mxu0 0.0
        %2436 = vmatpush1.msra.mxu0 0.0
        %2437 = vmatprep.subr.mxu0 0.0
        %2438 = vmatpush1.msra.mxu0 0.0
        %2439 = vmatprep.subr.mxu0 0.0
        %2440 = vmatpush1.msra.mxu0 0.0
        %2441 = vmatprep.subr.mxu0 0.0
        %2442 = vmatpush1.msra.mxu0 0.0
        %2443 = vmatprep.subr.mxu0 0.0
        %2444 = vmatpush1.msra.mxu0 0.0
        %2445 = vmatprep.subr.mxu0 0.0
        %2446 = vmatpush1.msra.mxu0 0.0
        %2447 = vmatprep.subr.mxu0 0.0
        %2448 = vmatpush1.msra.mxu0 0.0
        %2449 = vmatprep.mubr.f32.mxu0 0.0
        %2450 = vmatmul.mubr.f32.gmra.mrb[0].mxu0 %v2383
        %v2451 = vpop.f32.mrb[0].mxu0
        %v2452 = vadd.f32 %v2380, %v2451
        %v2453 = vpop.f32.mrb[0].mxu0
        %2454 = vdwg.mxu0
        %v2455 = vadd.f32 %v2452, %v2281
        %v2456 = vld [vmem:[%s16] sm:$0x1]
        %v2457 = vld [vmem:[%s17] sm:$0x1]
        %v2458 = vsel %vm691, %v2455, 0.0
        %2459 = vadd.xlane.f32.xlu0 %v2458
        %v2460 = vpop.xlane.xlu0 %2459
        %v2461 = vmul.f32 %v2460, %v2257
        %v2462 = vsub.f32 %v2455, %v2461
        %v2463 = vmul.f32 %v2462, %v2462
        %v2464 = vsel %vm691, %v2463, 0.0
        %2465 = vadd.xlane.f32.xlu0 %v2464
        %v2466 = vpop.xlane.xlu0 %2465
        %v2467 = vmul.f32 %v2466, %v2257
        %v2468 = vadd.f32 %v2467, 1e-05
        %v2469 = vrsqrt.pop %v2468
        %v2470 = vmul.f32 %v2462, %v2469
        %v2472 = vlaneseq
        %v2473 = vshrl.u32 %v2472, 7
        %v2474 = vsub.s32 0, %v2473
        %v2475 = vrot.slane %v2456, %v2474
        %v2477 = vmul.f32 %v2470, %v2475
        %v2479 = vlaneseq
        %v2480 = vshrl.u32 %v2479, 7
        %v2481 = vsub.s32 0, %v2480
        %v2482 = vrot.slane %v2457, %v2481
        %v2484 = vadd.f32 %v2477, %v2482
        %2485 = vst.msk [vmem:[%s674] sm:$0xff] %vm691, %v2484
        %s2486 = sand.u32 %s434, 1
        %s2487 = scalar_lea.sflag [#allocation4], %s2486
        %s2488 = sand.u32 %s434, 1
        %s2489 = smul.addr %s2488, 8
        %s2490 = scalar_lea.vmem [#allocation13], %s2489
        // Predicated region
        $region117: #{tpu_custom_call.1} parent=91 // pred_check
          %p2491 = pneg %p444
        $region118: #{tpu_custom_call.1} parent=91 // pred_check_branch
          %2493 = sbr.rel (%p2491) target = $region120
        $region119: #{tpu_custom_call.1} parent=91 // pred_region
          %s2495 = ssub.s32 128, 128
          %2496 = vsyncadd %s2487, %s2495
          %s2497 = smul.addr %s38, 128
          %s2498 = scalar_lea.hbm %s18, %s2497
          %s2500 = sshll.u32 %s2490, 4
          %s2501 = int_to_ptr.vmem [resolvable:$true] %s2500
          %2503 = dma.vmem_to_hbm [thread:$0]  %s2501, 128, %s2498, %s2487
        $region120: #{tpu_custom_call.1} parent=91 // pred_fallthru
          _
      $region92: #{tpu_custom_call.1} parent=5 // pred_fallthru
        _
      %p2504 = scmp.le.s32.totalorder 2, %s33
      // Predicated region
      $region121: #{tpu_custom_call.1} parent=5 // pred_check
        %p2505 = pneg %p2504
      $region122: #{tpu_custom_call.1} parent=5 // pred_check_branch
        %2507 = sbr.rel (%p2505) target = $region124
      $region123: #{tpu_custom_call.1} parent=5 // pred_region
        %s2508 = ssub.s32 %s33, 2
        // Predicated region
        $region125: #{tpu_custom_call.1} parent=123 // pred_check
          %p2509 = pneg %p450
        $region126: #{tpu_custom_call.1} parent=123 // pred_check_branch
          %2511 = sbr.rel (%p2509) target = $region128
        $region127: #{tpu_custom_call.1} parent=123 // pred_region
          %s2512 = sand.u32 %s435, 1
          %s2513 = scalar_lea.sflag [#allocation4], %s2512
          %s2514 = sand.u32 %s435, 1
          %s2515 = smul.addr %s2514, 8
          %s2516 = scalar_lea.vmem [#allocation13], %s2515
          %2517 = dma.done %s2513, 128
        $region128: #{tpu_custom_call.1} parent=123 // pred_fallthru
          _
      $region124: #{tpu_custom_call.1} parent=5 // pred_fallthru
        _
    $region6: #{tpu_custom_call.1} parent=1 // loop_footer
      %s37 = sadd.s32 1, %s33
    $region7: #{tpu_custom_call.1} parent=1 // loop_footer_branch
      %32 = sbr.rel target = $region3
    $region8: #{tpu_custom_call.1} parent=1 // loop_exit
      _
    %2518 = vsyncpa [#allocation3], 1
    %s2519 = scalar_lea.sflag [#allocation3], 1
    %2520 = vsyncpa %s2519, 1
    %2521 = vsyncpa [#allocation6], 1
    %2522 = vsyncpa [#allocation9], 1
    %2523 = vsyncpa [#allocation12], 1
    %2524 = vsyncpa [#allocation4], 1
    %s2525 = scalar_lea.sflag [#allocation4], 1
    %2526 = vsyncpa %s2525, 1

</llo_original>
